<compile_context>
chip_gen: v5e
topology: v5e:2x2
jax: 0.10.0
libtpu: 0.0.40
codegen_flags: <defaults>
</compile_context>

<pallas_src>
import functools

import jax
import jax.numpy as jnp
from jax.experimental import pallas as pl
from jax.experimental.pallas import tpu as pltpu

_IN = 784        # 28*28
_HID = 392
_OUT = 10
_H_PAD = 512     # 4 * 128
_N_PAD = 128


def _round_up(x, m):
    return ((x + m - 1) // m) * m


def _mlp_kernel(x_ref, w1_ref, b1_ref, w2_ref, b2_ref, o_ref):
    # x_ref:  (bt, 784) f32  (cast to bf16 here -> no wrapper pad/cast pass)
    # w1_ref: (784, 512) bf16       b1_ref: (1, 512) f32
    # w2_ref: (512, 128) bf16 (BN folded)   b2_ref: (1, 128) f32
    # o_ref:  (bt, 128) bf16 (lane-dense store; wrapper slices [:, :10])
    x = x_ref[...].astype(jnp.bfloat16)
    h = jnp.dot(x, w1_ref[...], preferred_element_type=jnp.float32)
    h = jnp.maximum(h + b1_ref[...], 0.0)                 # linear1 + ReLU
    # BatchNorm1d (eval) + Dropout (identity) are folded into w2/b2.
    y = jnp.dot(h.astype(jnp.bfloat16), w2_ref[...],
                preferred_element_type=jnp.float32)
    o_ref[...] = (y + b2_ref[...]).astype(o_ref.dtype)    # linear2 + bias


@functools.partial(jax.jit, static_argnames=("batch_tile",))
def digit_classifier_forward(x, params, *, batch_tile=1024):
    """x: (B, 1, 28, 28) or (B, 784) float32 -> logits (B, 10) float32."""
    B = x.shape[0]
    x2d = x.reshape(B, -1)                     # x.reshape(x.size(0), -1); no copy
    assert x2d.shape[1] == _IN

    w1, b1, gamma, beta, run_mean, run_var, w2, b2 = params
    eps = 1e-5

    # Fold BatchNorm1d (eval) into linear2 (it sits between ReLU and linear2,
    # so this is algebraically exact):
    #   (h*scale + shift) @ w2 + b2 == h @ (scale[:,None]*w2) + (shift@w2 + b2)
    scale = gamma / jnp.sqrt(run_var + eps)                # (392,)
    shift = beta - run_mean * scale                        # (392,)
    w2f = scale[:, None] * w2                              # (392, 10)
    b2f = shift @ w2 + b2                                  # (10,)

    # Pad only the hidden / output feature dims to 128-lane multiples.
    # Zero padding is value-preserving: zero b1 tail -> ReLU(0)=0, and the
    # corresponding w2 rows / extra output columns are zero.
    w1_p = jnp.pad(w1, ((0, 0), (0, _H_PAD - _HID))).astype(jnp.bfloat16)
    b1_p = jnp.pad(b1, (0, _H_PAD - _HID)).reshape(1, _H_PAD).astype(jnp.float32)
    w2_p = jnp.pad(w2f, ((0, _H_PAD - _HID), (0, _N_PAD - _OUT))).astype(jnp.bfloat16)
    b2_p = jnp.pad(b2f, (0, _N_PAD - _OUT)).reshape(1, _N_PAD).astype(jnp.float32)

    # Batch tile: sublane multiple, large enough to amortize per-step overhead.
    bt = min(batch_tile, _round_up(B, 8))
    # v7x megacore: when the batch is big, make sure the grid has >= 2 steps so
    # the "parallel" axis actually shards across both TensorCores.
    if bt >= 512 and pl.cdiv(B, bt) < 2:
        bt = max(256, _round_up(pl.cdiv(B, 2), 256))

    grid = (pl.cdiv(B, bt),)   # non-divisible last block is masked by Pallas

    out = pl.pallas_call(
        _mlp_kernel,
        out_shape=jax.ShapeDtypeStruct((B, _N_PAD), jnp.bfloat16),
        grid=grid,
        in_specs=[
            pl.BlockSpec((bt, _IN), lambda i: (i, 0)),          # x (streamed f32)
            pl.BlockSpec((_IN, _H_PAD), lambda i: (0, 0)),      # w1 (resident)
            pl.BlockSpec((1, _H_PAD), lambda i: (0, 0)),        # b1 (resident)
            pl.BlockSpec((_H_PAD, _N_PAD), lambda i: (0, 0)),   # w2 (resident, BN folded)
            pl.BlockSpec((1, _N_PAD), lambda i: (0, 0)),        # b2 (resident)
        ],
        out_specs=pl.BlockSpec((bt, _N_PAD), lambda i: (i, 0)),
        compiler_params=pltpu.CompilerParams(
            dimension_semantics=("parallel",),
            vmem_limit_bytes=32 * 1024 * 1024),
    )(x2d, w1_p, b1_p, w2_p, b2_p)

    # Only the first 10 lanes are real logits; upcast the tiny slice to f32.
    return out[:, :_OUT].astype(jnp.float32)


def init_params(key):
    """Deterministic parameter init mirroring PyTorch shapes.

    PyTorch Linear stores weight as (out, in); we store the transpose
    (in, out) so the kernel does x @ W.
    """
    k1, k2, k3, k4 = jax.random.split(key, 4)

    # linear1: 784 -> 392, uniform(+-1/sqrt(784)) like PyTorch default.
    bound1 = 1.0 / jnp.sqrt(784.0)
    w1 = jax.random.uniform(k1, (_IN, _HID), jnp.float32, -bound1, bound1)
    b1 = jax.random.uniform(k2, (_HID,), jnp.float32, -bound1, bound1)

    # BatchNorm1d(392) defaults: gamma=1, beta=0, running_mean=0, running_var=1.
    gamma = jnp.ones((_HID,), jnp.float32)
    beta = jnp.zeros((_HID,), jnp.float32)
    run_mean = jnp.zeros((_HID,), jnp.float32)
    run_var = jnp.ones((_HID,), jnp.float32)

    # linear2: 392 -> 10.
    bound2 = 1.0 / jnp.sqrt(392.0)
    w2 = jax.random.uniform(k3, (_HID, _OUT), jnp.float32, -bound2, bound2)
    b2 = jax.random.uniform(k4, (_OUT,), jnp.float32, -bound2, bound2)

    return (w1, b1, gamma, beta, run_mean, run_var, w2, b2)


if __name__ == "__main__":
    key = jax.random.PRNGKey(0)
    pkey, xkey = jax.random.split(key)

    params = init_params(pkey)

    # MNIST-like input: NCHW (B, 1, 28, 28); forward flattens to (B, 784).
    B = 8
    x = jax.random.normal(xkey, (B, 1, 28, 28), dtype=jnp.float32)

    logits = digit_classifier_forward(x, params)
    jax.block_until_ready(logits)
    assert logits.shape == (B, 10)

    w1, b1, gamma, beta, rm, rv, w2, b2 = params
    xf = x.reshape(B, -1)

    # Reference 1: exact f32 eval-mode semantics of the PyTorch module
    # (loose tolerance: kernel uses bf16 operands / bf16 output, f32 accum).
    h = jnp.maximum(xf @ w1 + b1, 0.0)
    h = (h - rm) / jnp.sqrt(rv + 1e-5) * gamma + beta
    ref_f32 = h @ w2 + b2
    assert jnp.allclose(logits, ref_f32, atol=5e-2, rtol=5e-2)

    # Reference 2: bf16-matched arithmetic (same folds/casts as the kernel).
    scale = gamma / jnp.sqrt(rv + 1e-5)
    shift = beta - rm * scale
    w2f = scale[:, None] * w2
    b2f = shift @ w2 + b2
    hb = jnp.maximum(
        jnp.dot(xf.astype(jnp.bfloat16), w1.astype(jnp.bfloat16),
                preferred_element_type=jnp.float32) + b1, 0.0)
    ref_bf16 = jnp.dot(hb.astype(jnp.bfloat16), w2f.astype(jnp.bfloat16),
                       preferred_element_type=jnp.float32) + b2f
    assert jnp.allclose(logits, ref_bf16, atol=2e-2, rtol=2e-2)

    print("KERNEL_OK")
</pallas_src>

<mosaic_0001>
module attributes {stable_mosaic.version = 11 : i64} {
  func.func @_mlp_kernel(%arg0: i32, %arg1: memref<8x784xf32, #tpu.memory_space<vmem>>, %arg2: memref<784x512xbf16, #tpu.memory_space<vmem>>, %arg3: memref<1x512xf32, #tpu.memory_space<vmem>>, %arg4: memref<512x128xbf16, #tpu.memory_space<vmem>>, %arg5: memref<1x128xf32, #tpu.memory_space<vmem>>, %arg6: memref<8x128xbf16, #tpu.memory_space<vmem>>) attributes {dimension_semantics = [#tpu.dimension_semantics<parallel>], iteration_bounds = array<i64: 1>, scalar_prefetch = 0 : i64, scratch_operands = 0 : i64, tpu.core_type = #tpu.core_type<tc>, window_params = [{transform_indices = @transform_0, window_bounds = array<i64: 8, 784>}, {pipeline_mode = #tpu.pipeline_mode<synchronous>, transform_indices = @transform_1, window_bounds = array<i64: 784, 512>}, {pipeline_mode = #tpu.pipeline_mode<synchronous>, transform_indices = @transform_2, window_bounds = array<i64: 1, 512>}, {pipeline_mode = #tpu.pipeline_mode<synchronous>, transform_indices = @transform_3, window_bounds = array<i64: 512, 128>}, {pipeline_mode = #tpu.pipeline_mode<synchronous>, transform_indices = @transform_4, window_bounds = array<i64: 1, 128>}, {transform_indices = @transform_5, window_bounds = array<i64: 8, 128>}]} {
    %c0 = arith.constant 0 : index
    %c0_0 = arith.constant 0 : index
    %0 = vector.load %arg1[%c0, %c0_0] : memref<8x784xf32, #tpu.memory_space<vmem>>, vector<8x784xf32>
    %1 = arith.truncf %0 : vector<8x784xf32> to vector<8x784xbf16>
    %c0_1 = arith.constant 0 : index
    %c0_2 = arith.constant 0 : index
    %2 = vector.load %arg2[%c0_1, %c0_2] : memref<784x512xbf16, #tpu.memory_space<vmem>>, vector<784x512xbf16>
    %cst = arith.constant dense<0.000000e+00> : vector<8x512xf32>
    %3 = tpu.matmul %1, %2, %cst {dimension_numbers = #tpu.dot_dimension_numbers<[1], [0], [0], [1], [0, 0, 1, 1], [], []>} : vector<8x784xbf16>, vector<784x512xbf16>, vector<8x512xf32> -> vector<8x512xf32>
    %c0_3 = arith.constant 0 : index
    %c0_4 = arith.constant 0 : index
    %4 = vector.load %arg3[%c0_3, %c0_4] : memref<1x512xf32, #tpu.memory_space<vmem>>, vector<1x512xf32>
    %5 = vector.broadcast %4 : vector<1x512xf32> to vector<8x512xf32>
    %6 = arith.addf %3, %5 : vector<8x512xf32>
    %cst_5 = arith.constant 0.000000e+00 : f32
    %7 = vector.broadcast %cst_5 : f32 to vector<8x512xf32>
    %8 = arith.maximumf %6, %7 : vector<8x512xf32>
    %9 = arith.truncf %8 : vector<8x512xf32> to vector<8x512xbf16>
    %c0_6 = arith.constant 0 : index
    %c0_7 = arith.constant 0 : index
    %10 = vector.load %arg4[%c0_6, %c0_7] : memref<512x128xbf16, #tpu.memory_space<vmem>>, vector<512x128xbf16>
    %cst_8 = arith.constant dense<0.000000e+00> : vector<8x128xf32>
    %11 = tpu.matmul %9, %10, %cst_8 {dimension_numbers = #tpu.dot_dimension_numbers<[1], [0], [0], [1], [0, 0, 1, 1], [], []>} : vector<8x512xbf16>, vector<512x128xbf16>, vector<8x128xf32> -> vector<8x128xf32>
    %c0_9 = arith.constant 0 : index
    %c0_10 = arith.constant 0 : index
    %12 = vector.load %arg5[%c0_9, %c0_10] : memref<1x128xf32, #tpu.memory_space<vmem>>, vector<1x128xf32>
    %13 = vector.broadcast %12 : vector<1x128xf32> to vector<8x128xf32>
    %14 = arith.addf %11, %13 : vector<8x128xf32>
    %15 = arith.truncf %14 : vector<8x128xf32> to vector<8x128xbf16>
    %c0_11 = arith.constant 0 : index
    %c0_12 = arith.constant 0 : index
    %16 = vector.load %arg6[%c0_11, %c0_12] : memref<8x128xbf16, #tpu.memory_space<vmem>>, vector<8x128xbf16>
    tpu.vector_store %arg6[%c0_11, %c0_12], %15 {strides = array<i32>} : memref<8x128xbf16, #tpu.memory_space<vmem>>, vector<8x128xbf16>,
    return
  }
  func.func @transform_0(%arg0: i32) -> (i32, i32) {
    %c0_i32 = arith.constant 0 : i32
    %c0_i32_0 = arith.constant 0 : i32
    return %arg0, %c0_i32 : i32, i32
  }
  func.func @transform_1(%arg0: i32) -> (i32, i32) {
    %c0_i32 = arith.constant 0 : i32
    %c0_i32_0 = arith.constant 0 : i32
    %c0_i32_1 = arith.constant 0 : i32
    return %c0_i32, %c0_i32_0 : i32, i32
  }
  func.func @transform_2(%arg0: i32) -> (i32, i32) {
    %c0_i32 = arith.constant 0 : i32
    %c0_i32_0 = arith.constant 0 : i32
    %c0_i32_1 = arith.constant 0 : i32
    return %c0_i32, %c0_i32_0 : i32, i32
  }
  func.func @transform_3(%arg0: i32) -> (i32, i32) {
    %c0_i32 = arith.constant 0 : i32
    %c0_i32_0 = arith.constant 0 : i32
    %c0_i32_1 = arith.constant 0 : i32
    return %c0_i32, %c0_i32_0 : i32, i32
  }
  func.func @transform_4(%arg0: i32) -> (i32, i32) {
    %c0_i32 = arith.constant 0 : i32
    %c0_i32_0 = arith.constant 0 : i32
    %c0_i32_1 = arith.constant 0 : i32
    return %c0_i32, %c0_i32_0 : i32, i32
  }
  func.func @transform_5(%arg0: i32) -> (i32, i32) {
    %c0_i32 = arith.constant 0 : i32
    %c0_i32_0 = arith.constant 0 : i32
    return %arg0, %c0_i32 : i32, i32
  }
}

</mosaic_0001>

<llo_original>
// kernel: digit_classifier_forward.1
$region0: #{digit_classifier_forward.1}
  #allocation0 [shape = 'u32[]', space=smem, size = 0x4, offset = 0x4, fixed_abs, tag = 'smem constant byte address 0x4 - core index']
  #allocation1 [shape = 'u32[72,128]{1,0:T(1,128)}', space=vmem, size = 0x9000, scoped, tag = 'internal scratch']
  %s0 = inlined_call_operand.vmem [shape: f32[8,784], index: 0, kind: input, shape index: {}]
  %s1 = inlined_call_operand.vmem [shape: bf16[784,512], index: 1, kind: input, shape index: {}]
  %s2 = inlined_call_operand.vmem [shape: f32[1,512], index: 2, kind: input, shape index: {}]
  %s3 = inlined_call_operand.vmem [shape: bf16[512,128], index: 3, kind: input, shape index: {}]
  %s4 = inlined_call_operand.vmem [shape: f32[1,128], index: 4, kind: input, shape index: {}]
  %s5 = inlined_call_operand.vmem [shape: bf16[8,128], index: 5, kind: output, shape index: {}]
  %s6 = sld [smem:[#allocation0]]
  $region30: #{digit_classifier_forward.1} parent=0
    _
  %s8 = ssub.s32 1, %s6
  %s9 = scalar_select 0, %s8, %s6
  // Predicated region
  $region2: #{digit_classifier_forward.1} parent=0 // pred_check
    _
  $region3: #{digit_classifier_forward.1} parent=0 // pred_check_branch
    %11 = sbr.rel (0) target = $region5
  $region4: #{digit_classifier_forward.1} parent=0 // pred_region
    _
  $region5: #{digit_classifier_forward.1} parent=0 // pred_fallthru
    _
  // Predicated region
  $region6: #{digit_classifier_forward.1} parent=0 // pred_check
    _
  $region7: #{digit_classifier_forward.1} parent=0 // pred_check_branch
    %13 = sbr.rel (0) target = $region9
  $region8: #{digit_classifier_forward.1} parent=0 // pred_region
    _
  $region9: #{digit_classifier_forward.1} parent=0 // pred_fallthru
    _
  // Predicated region
  $region10: #{digit_classifier_forward.1} parent=0 // pred_check
    _
  $region11: #{digit_classifier_forward.1} parent=0 // pred_check_branch
    %15 = sbr.rel (0) target = $region13
  $region12: #{digit_classifier_forward.1} parent=0 // pred_region
    _
  $region13: #{digit_classifier_forward.1} parent=0 // pred_fallthru
    _
  // Predicated region
  $region14: #{digit_classifier_forward.1} parent=0 // pred_check
    _
  $region15: #{digit_classifier_forward.1} parent=0 // pred_check_branch
    %17 = sbr.rel (0) target = $region17
  $region16: #{digit_classifier_forward.1} parent=0 // pred_region
    _
  $region17: #{digit_classifier_forward.1} parent=0 // pred_fallthru
    _
  // Predicated region
  $region18: #{digit_classifier_forward.1} parent=0 // pred_check
    _
  $region19: #{digit_classifier_forward.1} parent=0 // pred_check_branch
    %19 = sbr.rel (0) target = $region21
  $region20: #{digit_classifier_forward.1} parent=0 // pred_region
    _
  $region21: #{digit_classifier_forward.1} parent=0 // pred_fallthru
    _
  %v21 = vld [vmem:[%s0] sm:$0xff]
  %v22 = vld [vmem:[%s0 + $0x8] sm:$0xff]
  %v23 = vld [vmem:[%s0 + $0x10] sm:$0xff]
  %v24 = vld [vmem:[%s0 + $0x18] sm:$0xff]
  %v25 = vld [vmem:[%s0 + $0x20] sm:$0xff]
  %v26 = vld [vmem:[%s0 + $0x28] sm:$0xff]
  %v27 = vld [vmem:[%s0 + $0x30] sm:$0xff]
  %v28 = vpack.c.bf16 %v21, %v21
  %v29 = vpack.c.bf16 %v22, %v22
  %v30 = vpack.c.bf16 %v23, %v23
  %v31 = vpack.c.bf16 %v24, %v24
  %v32 = vpack.c.bf16 %v25, %v25
  %v33 = vpack.c.bf16 %v26, %v26
  %v34 = vpack.c.bf16 %v27, %v27
  %v35 = vld [vmem:[%s1] sm:$0xff]
  %v36 = vld [vmem:[%s1 + $0x8] sm:$0xff]
  %v37 = vld [vmem:[%s1 + $0x10] sm:$0xff]
  %v38 = vld [vmem:[%s1 + $0x18] sm:$0xff]
  %v39 = vld [vmem:[%s1 + $0x20] sm:$0xff]
  %v40 = vld [vmem:[%s1 + $0x28] sm:$0xff]
  %v41 = vld [vmem:[%s1 + $0x30] sm:$0xff]
  %v42 = vld [vmem:[%s1 + $0x38] sm:$0xff]
  %v43 = vld [vmem:[%s1 + $0x40] sm:$0xff]
  %v44 = vld [vmem:[%s1 + $0x48] sm:$0xff]
  %v45 = vld [vmem:[%s1 + $0x50] sm:$0xff]
  %v46 = vld [vmem:[%s1 + $0x58] sm:$0xff]
  %v47 = vld [vmem:[%s1 + $0x60] sm:$0xff]
  %v48 = vld [vmem:[%s1 + $0x68] sm:$0xff]
  %v49 = vld [vmem:[%s1 + $0x70] sm:$0xff]
  %v50 = vld [vmem:[%s1 + $0x78] sm:$0xff]
  %v51 = vld [vmem:[%s1 + $0x80] sm:$0xff]
  %v52 = vld [vmem:[%s1 + $0x88] sm:$0xff]
  %v53 = vld [vmem:[%s1 + $0x90] sm:$0xff]
  %v54 = vld [vmem:[%s1 + $0x98] sm:$0xff]
  %v55 = vld [vmem:[%s1 + $0xa0] sm:$0xff]
  %v56 = vld [vmem:[%s1 + $0xa8] sm:$0xff]
  %v57 = vld [vmem:[%s1 + $0xb0] sm:$0xff]
  %v58 = vld [vmem:[%s1 + $0xb8] sm:$0xff]
  %v59 = vld [vmem:[%s1 + $0xc0] sm:$0xff]
  %v60 = vld [vmem:[%s1 + $0xc8] sm:$0xff]
  %v61 = vld [vmem:[%s1 + $0xd0] sm:$0xff]
  %v62 = vld [vmem:[%s1 + $0xd8] sm:$0xff]
  %v63 = vld [vmem:[%s1 + $0xe0] sm:$0xff]
  %v64 = vld [vmem:[%s1 + $0xe8] sm:$0xff]
  %v65 = vld [vmem:[%s1 + $0xf0] sm:$0xff]
  %v66 = vld [vmem:[%s1 + $0xf8] sm:$0xff]
  %v67 = vld [vmem:[%s1 + $0x100] sm:$0xff]
  %v68 = vld [vmem:[%s1 + $0x108] sm:$0xff]
  %v69 = vld [vmem:[%s1 + $0x110] sm:$0xff]
  %v70 = vld [vmem:[%s1 + $0x118] sm:$0xff]
  %v71 = vld [vmem:[%s1 + $0x120] sm:$0xff]
  %v72 = vld [vmem:[%s1 + $0x128] sm:$0xff]
  %v73 = vld [vmem:[%s1 + $0x130] sm:$0xff]
  %v74 = vld [vmem:[%s1 + $0x138] sm:$0xff]
  %v75 = vld [vmem:[%s1 + $0x140] sm:$0xff]
  %v76 = vld [vmem:[%s1 + $0x148] sm:$0xff]
  %v77 = vld [vmem:[%s1 + $0x150] sm:$0xff]
  %v78 = vld [vmem:[%s1 + $0x158] sm:$0xff]
  %v79 = vld [vmem:[%s1 + $0x160] sm:$0xff]
  %v80 = vld [vmem:[%s1 + $0x168] sm:$0xff]
  %v81 = vld [vmem:[%s1 + $0x170] sm:$0xff]
  %v82 = vld [vmem:[%s1 + $0x178] sm:$0xff]
  %v83 = vld [vmem:[%s1 + $0x180] sm:$0xff]
  %v84 = vld [vmem:[%s1 + $0x188] sm:$0xff]
  %v85 = vld [vmem:[%s1 + $0x190] sm:$0xff]
  %v86 = vld [vmem:[%s1 + $0x198] sm:$0xff]
  %v87 = vld [vmem:[%s1 + $0x1a0] sm:$0xff]
  %v88 = vld [vmem:[%s1 + $0x1a8] sm:$0xff]
  %v89 = vld [vmem:[%s1 + $0x1b0] sm:$0xff]
  %v90 = vld [vmem:[%s1 + $0x1b8] sm:$0xff]
  %v91 = vld [vmem:[%s1 + $0x1c0] sm:$0xff]
  %v92 = vld [vmem:[%s1 + $0x1c8] sm:$0xff]
  %v93 = vld [vmem:[%s1 + $0x1d0] sm:$0xff]
  %v94 = vld [vmem:[%s1 + $0x1d8] sm:$0xff]
  %v95 = vld [vmem:[%s1 + $0x1e0] sm:$0xff]
  %v96 = vld [vmem:[%s1 + $0x1e8] sm:$0xff]
  %v97 = vld [vmem:[%s1 + $0x1f0] sm:$0xff]
  %v98 = vld [vmem:[%s1 + $0x1f8] sm:$0xff]
  %v99 = vld [vmem:[%s1 + $0x200] sm:$0xff]
  %v100 = vld [vmem:[%s1 + $0x208] sm:$0xff]
  %v101 = vld [vmem:[%s1 + $0x210] sm:$0xff]
  %v102 = vld [vmem:[%s1 + $0x218] sm:$0xff]
  %v103 = vld [vmem:[%s1 + $0x220] sm:$0xff]
  %v104 = vld [vmem:[%s1 + $0x228] sm:$0xff]
  %v105 = vld [vmem:[%s1 + $0x230] sm:$0xff]
  %v106 = vld [vmem:[%s1 + $0x238] sm:$0xff]
  %v107 = vld [vmem:[%s1 + $0x240] sm:$0xff]
  %v108 = vld [vmem:[%s1 + $0x248] sm:$0xff]
  %v109 = vld [vmem:[%s1 + $0x250] sm:$0xff]
  %v110 = vld [vmem:[%s1 + $0x258] sm:$0xff]
  %v111 = vld [vmem:[%s1 + $0x260] sm:$0xff]
  %v112 = vld [vmem:[%s1 + $0x268] sm:$0xff]
  %v113 = vld [vmem:[%s1 + $0x270] sm:$0xff]
  %v114 = vld [vmem:[%s1 + $0x278] sm:$0xff]
  %v115 = vld [vmem:[%s1 + $0x280] sm:$0xff]
  %v116 = vld [vmem:[%s1 + $0x288] sm:$0xff]
  %v117 = vld [vmem:[%s1 + $0x290] sm:$0xff]
  %v118 = vld [vmem:[%s1 + $0x298] sm:$0xff]
  %v119 = vld [vmem:[%s1 + $0x2a0] sm:$0xff]
  %v120 = vld [vmem:[%s1 + $0x2a8] sm:$0xff]
  %v121 = vld [vmem:[%s1 + $0x2b0] sm:$0xff]
  %v122 = vld [vmem:[%s1 + $0x2b8] sm:$0xff]
  %v123 = vld [vmem:[%s1 + $0x2c0] sm:$0xff]
  %v124 = vld [vmem:[%s1 + $0x2c8] sm:$0xff]
  %v125 = vld [vmem:[%s1 + $0x2d0] sm:$0xff]
  %v126 = vld [vmem:[%s1 + $0x2d8] sm:$0xff]
  %v127 = vld [vmem:[%s1 + $0x2e0] sm:$0xff]
  %v128 = vld [vmem:[%s1 + $0x2e8] sm:$0xff]
  %v129 = vld [vmem:[%s1 + $0x2f0] sm:$0xff]
  %v130 = vld [vmem:[%s1 + $0x2f8] sm:$0xff]
  %v131 = vld [vmem:[%s1 + $0x300] sm:$0xff]
  %v132 = vld [vmem:[%s1 + $0x308] sm:$0xff]
  %v133 = vld [vmem:[%s1 + $0x310] sm:$0xff]
  %v134 = vld [vmem:[%s1 + $0x318] sm:$0xff]
  %v135 = vld [vmem:[%s1 + $0x320] sm:$0xff]
  %v136 = vld [vmem:[%s1 + $0x328] sm:$0xff]
  %v137 = vld [vmem:[%s1 + $0x330] sm:$0xff]
  %v138 = vld [vmem:[%s1 + $0x338] sm:$0xff]
  %v139 = vld [vmem:[%s1 + $0x340] sm:$0xff]
  %v140 = vld [vmem:[%s1 + $0x348] sm:$0xff]
  %v141 = vld [vmem:[%s1 + $0x350] sm:$0xff]
  %v142 = vld [vmem:[%s1 + $0x358] sm:$0xff]
  %v143 = vld [vmem:[%s1 + $0x360] sm:$0xff]
  %v144 = vld [vmem:[%s1 + $0x368] sm:$0xff]
  %v145 = vld [vmem:[%s1 + $0x370] sm:$0xff]
  %v146 = vld [vmem:[%s1 + $0x378] sm:$0xff]
  %v147 = vld [vmem:[%s1 + $0x380] sm:$0xff]
  %v148 = vld [vmem:[%s1 + $0x388] sm:$0xff]
  %v149 = vld [vmem:[%s1 + $0x390] sm:$0xff]
  %v150 = vld [vmem:[%s1 + $0x398] sm:$0xff]
  %v151 = vld [vmem:[%s1 + $0x3a0] sm:$0xff]
  %v152 = vld [vmem:[%s1 + $0x3a8] sm:$0xff]
  %v153 = vld [vmem:[%s1 + $0x3b0] sm:$0xff]
  %v154 = vld [vmem:[%s1 + $0x3b8] sm:$0xff]
  %v155 = vld [vmem:[%s1 + $0x3c0] sm:$0xff]
  %v156 = vld [vmem:[%s1 + $0x3c8] sm:$0xff]
  %v157 = vld [vmem:[%s1 + $0x3d0] sm:$0xff]
  %v158 = vld [vmem:[%s1 + $0x3d8] sm:$0xff]
  %v159 = vld [vmem:[%s1 + $0x3e0] sm:$0xff]
  %v160 = vld [vmem:[%s1 + $0x3e8] sm:$0xff]
  %v161 = vld [vmem:[%s1 + $0x3f0] sm:$0xff]
  %v162 = vld [vmem:[%s1 + $0x3f8] sm:$0xff]
  %v163 = vld [vmem:[%s1 + $0x400] sm:$0xff]
  %v164 = vld [vmem:[%s1 + $0x408] sm:$0xff]
  %v165 = vld [vmem:[%s1 + $0x410] sm:$0xff]
  %v166 = vld [vmem:[%s1 + $0x418] sm:$0xff]
  %v167 = vld [vmem:[%s1 + $0x420] sm:$0xff]
  %v168 = vld [vmem:[%s1 + $0x428] sm:$0xff]
  %v169 = vld [vmem:[%s1 + $0x430] sm:$0xff]
  %v170 = vld [vmem:[%s1 + $0x438] sm:$0xff]
  %v171 = vld [vmem:[%s1 + $0x440] sm:$0xff]
  %v172 = vld [vmem:[%s1 + $0x448] sm:$0xff]
  %v173 = vld [vmem:[%s1 + $0x450] sm:$0xff]
  %v174 = vld [vmem:[%s1 + $0x458] sm:$0xff]
  %v175 = vld [vmem:[%s1 + $0x460] sm:$0xff]
  %v176 = vld [vmem:[%s1 + $0x468] sm:$0xff]
  %v177 = vld [vmem:[%s1 + $0x470] sm:$0xff]
  %v178 = vld [vmem:[%s1 + $0x478] sm:$0xff]
  %v179 = vld [vmem:[%s1 + $0x480] sm:$0xff]
  %v180 = vld [vmem:[%s1 + $0x488] sm:$0xff]
  %v181 = vld [vmem:[%s1 + $0x490] sm:$0xff]
  %v182 = vld [vmem:[%s1 + $0x498] sm:$0xff]
  %v183 = vld [vmem:[%s1 + $0x4a0] sm:$0xff]
  %v184 = vld [vmem:[%s1 + $0x4a8] sm:$0xff]
  %v185 = vld [vmem:[%s1 + $0x4b0] sm:$0xff]
  %v186 = vld [vmem:[%s1 + $0x4b8] sm:$0xff]
  %v187 = vld [vmem:[%s1 + $0x4c0] sm:$0xff]
  %v188 = vld [vmem:[%s1 + $0x4c8] sm:$0xff]
  %v189 = vld [vmem:[%s1 + $0x4d0] sm:$0xff]
  %v190 = vld [vmem:[%s1 + $0x4d8] sm:$0xff]
  %v191 = vld [vmem:[%s1 + $0x4e0] sm:$0xff]
  %v192 = vld [vmem:[%s1 + $0x4e8] sm:$0xff]
  %v193 = vld [vmem:[%s1 + $0x4f0] sm:$0xff]
  %v194 = vld [vmem:[%s1 + $0x4f8] sm:$0xff]
  %v195 = vld [vmem:[%s1 + $0x500] sm:$0xff]
  %v196 = vld [vmem:[%s1 + $0x508] sm:$0xff]
  %v197 = vld [vmem:[%s1 + $0x510] sm:$0xff]
  %v198 = vld [vmem:[%s1 + $0x518] sm:$0xff]
  %v199 = vld [vmem:[%s1 + $0x520] sm:$0xff]
  %v200 = vld [vmem:[%s1 + $0x528] sm:$0xff]
  %v201 = vld [vmem:[%s1 + $0x530] sm:$0xff]
  %v202 = vld [vmem:[%s1 + $0x538] sm:$0xff]
  %v203 = vld [vmem:[%s1 + $0x540] sm:$0xff]
  %v204 = vld [vmem:[%s1 + $0x548] sm:$0xff]
  %v205 = vld [vmem:[%s1 + $0x550] sm:$0xff]
  %v206 = vld [vmem:[%s1 + $0x558] sm:$0xff]
  %v207 = vld [vmem:[%s1 + $0x560] sm:$0xff]
  %v208 = vld [vmem:[%s1 + $0x568] sm:$0xff]
  %v209 = vld [vmem:[%s1 + $0x570] sm:$0xff]
  %v210 = vld [vmem:[%s1 + $0x578] sm:$0xff]
  %v211 = vld [vmem:[%s1 + $0x580] sm:$0xff]
  %v212 = vld [vmem:[%s1 + $0x588] sm:$0xff]
  %v213 = vld [vmem:[%s1 + $0x590] sm:$0xff]
  %v214 = vld [vmem:[%s1 + $0x598] sm:$0xff]
  %v215 = vld [vmem:[%s1 + $0x5a0] sm:$0xff]
  %v216 = vld [vmem:[%s1 + $0x5a8] sm:$0xff]
  %v217 = vld [vmem:[%s1 + $0x5b0] sm:$0xff]
  %v218 = vld [vmem:[%s1 + $0x5b8] sm:$0xff]
  %v219 = vld [vmem:[%s1 + $0x5c0] sm:$0xff]
  %v220 = vld [vmem:[%s1 + $0x5c8] sm:$0xff]
  %v221 = vld [vmem:[%s1 + $0x5d0] sm:$0xff]
  %v222 = vld [vmem:[%s1 + $0x5d8] sm:$0xff]
  %v223 = vld [vmem:[%s1 + $0x5e0] sm:$0xff]
  %v224 = vld [vmem:[%s1 + $0x5e8] sm:$0xff]
  %v225 = vld [vmem:[%s1 + $0x5f0] sm:$0xff]
  %v226 = vld [vmem:[%s1 + $0x5f8] sm:$0xff]
  %v227 = vld [vmem:[%s1 + $0x600] sm:$0xff]
  %v228 = vld [vmem:[%s1 + $0x608] sm:$0xff]
  %v229 = vld [vmem:[%s1 + $0x610] sm:$0xff]
  %v230 = vld [vmem:[%s1 + $0x618] sm:$0xff]
  %v231 = vld [vmem:[%s2] sm:$0xf]
  %v233 = vperm.slane %v231, 0
  %v234 = vperm.slane %v231, 1
  %v235 = vperm.slane %v231, 2
  %v236 = vperm.slane %v231, 3
  %v437 = vunpack.c.l.b16 %v35
  %v438 = vunpack.c.h.b16 %v35
  %v439 = vunpack.c.l.b16 %v36
  %v440 = vunpack.c.h.b16 %v36
  %v441 = vunpack.c.l.b16 %v37
  %v442 = vunpack.c.h.b16 %v37
  %v443 = vunpack.c.l.b16 %v38
  %v444 = vunpack.c.h.b16 %v38
  %v445 = vunpack.c.l.b16 %v39
  %v446 = vunpack.c.h.b16 %v39
  %v447 = vunpack.c.l.b16 %v40
  %v448 = vunpack.c.h.b16 %v40
  %v449 = vunpack.c.l.b16 %v41
  %v450 = vunpack.c.h.b16 %v41
  %v451 = vunpack.c.l.b16 %v42
  %v452 = vunpack.c.h.b16 %v42
  %v453 = vunpack.c.l.b16 %v43
  %v454 = vunpack.c.h.b16 %v43
  %v455 = vunpack.c.l.b16 %v44
  %v456 = vunpack.c.h.b16 %v44
  %v457 = vunpack.c.l.b16 %v45
  %v458 = vunpack.c.h.b16 %v45
  %v459 = vunpack.c.l.b16 %v46
  %v460 = vunpack.c.h.b16 %v46
  %v461 = vunpack.c.l.b16 %v47
  %v462 = vunpack.c.h.b16 %v47
  %v463 = vunpack.c.l.b16 %v48
  %v464 = vunpack.c.h.b16 %v48
  %v465 = vunpack.c.l.b16 %v49
  %v466 = vunpack.c.h.b16 %v49
  %v467 = vunpack.c.l.b16 %v50
  %v468 = vunpack.c.h.b16 %v50
  %v469 = vunpack.c.l.b16 %v51
  %v470 = vunpack.c.h.b16 %v51
  %v471 = vunpack.c.l.b16 %v52
  %v472 = vunpack.c.h.b16 %v52
  %v473 = vunpack.c.l.b16 %v53
  %v474 = vunpack.c.h.b16 %v53
  %v475 = vunpack.c.l.b16 %v54
  %v476 = vunpack.c.h.b16 %v54
  %v477 = vunpack.c.l.b16 %v55
  %v478 = vunpack.c.h.b16 %v55
  %v479 = vunpack.c.l.b16 %v56
  %v480 = vunpack.c.h.b16 %v56
  %v481 = vunpack.c.l.b16 %v57
  %v482 = vunpack.c.h.b16 %v57
  %v483 = vunpack.c.l.b16 %v58
  %v484 = vunpack.c.h.b16 %v58
  %v485 = vunpack.c.l.b16 %v59
  %v486 = vunpack.c.h.b16 %v59
  %v487 = vunpack.c.l.b16 %v60
  %v488 = vunpack.c.h.b16 %v60
  %v489 = vunpack.c.l.b16 %v61
  %v490 = vunpack.c.h.b16 %v61
  %v491 = vunpack.c.l.b16 %v62
  %v492 = vunpack.c.h.b16 %v62
  %v493 = vunpack.c.l.b16 %v63
  %v494 = vunpack.c.h.b16 %v63
  %v495 = vunpack.c.l.b16 %v64
  %v496 = vunpack.c.h.b16 %v64
  %v497 = vunpack.c.l.b16 %v65
  %v498 = vunpack.c.h.b16 %v65
  %v499 = vunpack.c.l.b16 %v66
  %v500 = vunpack.c.h.b16 %v66
  %v501 = vunpack.c.l.b16 %v67
  %v502 = vunpack.c.h.b16 %v67
  %v503 = vunpack.c.l.b16 %v68
  %v504 = vunpack.c.h.b16 %v68
  %v505 = vunpack.c.l.b16 %v69
  %v506 = vunpack.c.h.b16 %v69
  %v507 = vunpack.c.l.b16 %v70
  %v508 = vunpack.c.h.b16 %v70
  %v509 = vunpack.c.l.b16 %v71
  %v510 = vunpack.c.h.b16 %v71
  %v511 = vunpack.c.l.b16 %v72
  %v512 = vunpack.c.h.b16 %v72
  %v513 = vunpack.c.l.b16 %v73
  %v514 = vunpack.c.h.b16 %v73
  %v515 = vunpack.c.l.b16 %v74
  %v516 = vunpack.c.h.b16 %v74
  %v517 = vunpack.c.l.b16 %v75
  %v518 = vunpack.c.h.b16 %v75
  %v519 = vunpack.c.l.b16 %v76
  %v520 = vunpack.c.h.b16 %v76
  %v521 = vunpack.c.l.b16 %v77
  %v522 = vunpack.c.h.b16 %v77
  %v523 = vunpack.c.l.b16 %v78
  %v524 = vunpack.c.h.b16 %v78
  %v525 = vunpack.c.l.b16 %v79
  %v526 = vunpack.c.h.b16 %v79
  %v527 = vunpack.c.l.b16 %v80
  %v528 = vunpack.c.h.b16 %v80
  %v529 = vunpack.c.l.b16 %v81
  %v530 = vunpack.c.h.b16 %v81
  %v531 = vunpack.c.l.b16 %v82
  %v532 = vunpack.c.h.b16 %v82
  %v533 = vunpack.c.l.b16 %v83
  %v534 = vunpack.c.h.b16 %v83
  %v535 = vunpack.c.l.b16 %v84
  %v536 = vunpack.c.h.b16 %v84
  %v537 = vunpack.c.l.b16 %v85
  %v538 = vunpack.c.h.b16 %v85
  %v539 = vunpack.c.l.b16 %v86
  %v540 = vunpack.c.h.b16 %v86
  %v541 = vunpack.c.l.b16 %v87
  %v542 = vunpack.c.h.b16 %v87
  %v543 = vunpack.c.l.b16 %v88
  %v544 = vunpack.c.h.b16 %v88
  %v545 = vunpack.c.l.b16 %v89
  %v546 = vunpack.c.h.b16 %v89
  %v547 = vunpack.c.l.b16 %v90
  %v548 = vunpack.c.h.b16 %v90
  %v549 = vunpack.c.l.b16 %v91
  %v550 = vunpack.c.h.b16 %v91
  %v551 = vunpack.c.l.b16 %v92
  %v552 = vunpack.c.h.b16 %v92
  %v553 = vunpack.c.l.b16 %v93
  %v554 = vunpack.c.h.b16 %v93
  %v555 = vunpack.c.l.b16 %v94
  %v556 = vunpack.c.h.b16 %v94
  %v557 = vunpack.c.l.b16 %v95
  %v558 = vunpack.c.h.b16 %v95
  %v559 = vunpack.c.l.b16 %v96
  %v560 = vunpack.c.h.b16 %v96
  %v561 = vunpack.c.l.b16 %v97
  %v562 = vunpack.c.h.b16 %v97
  %v563 = vunpack.c.l.b16 %v98
  %v564 = vunpack.c.h.b16 %v98
  %v565 = vunpack.c.l.b16 %v99
  %v566 = vunpack.c.h.b16 %v99
  %v567 = vunpack.c.l.b16 %v100
  %v568 = vunpack.c.h.b16 %v100
  %v569 = vunpack.c.l.b16 %v101
  %v570 = vunpack.c.h.b16 %v101
  %v571 = vunpack.c.l.b16 %v102
  %v572 = vunpack.c.h.b16 %v102
  %v573 = vunpack.c.l.b16 %v103
  %v574 = vunpack.c.h.b16 %v103
  %v575 = vunpack.c.l.b16 %v104
  %v576 = vunpack.c.h.b16 %v104
  %v577 = vunpack.c.l.b16 %v105
  %v578 = vunpack.c.h.b16 %v105
  %v579 = vunpack.c.l.b16 %v106
  %v580 = vunpack.c.h.b16 %v106
  %v581 = vunpack.c.l.b16 %v107
  %v582 = vunpack.c.h.b16 %v107
  %v583 = vunpack.c.l.b16 %v108
  %v584 = vunpack.c.h.b16 %v108
  %v585 = vunpack.c.l.b16 %v109
  %v586 = vunpack.c.h.b16 %v109
  %v587 = vunpack.c.l.b16 %v110
  %v588 = vunpack.c.h.b16 %v110
  %v589 = vunpack.c.l.b16 %v111
  %v590 = vunpack.c.h.b16 %v111
  %v591 = vunpack.c.l.b16 %v112
  %v592 = vunpack.c.h.b16 %v112
  %v593 = vunpack.c.l.b16 %v113
  %v594 = vunpack.c.h.b16 %v113
  %v595 = vunpack.c.l.b16 %v114
  %v596 = vunpack.c.h.b16 %v114
  %v597 = vunpack.c.l.b16 %v115
  %v598 = vunpack.c.h.b16 %v115
  %v599 = vunpack.c.l.b16 %v116
  %v600 = vunpack.c.h.b16 %v116
  %v601 = vunpack.c.l.b16 %v117
  %v602 = vunpack.c.h.b16 %v117
  %v603 = vunpack.c.l.b16 %v118
  %v604 = vunpack.c.h.b16 %v118
  %v605 = vunpack.c.l.b16 %v119
  %v606 = vunpack.c.h.b16 %v119
  %v607 = vunpack.c.l.b16 %v120
  %v608 = vunpack.c.h.b16 %v120
  %v609 = vunpack.c.l.b16 %v121
  %v610 = vunpack.c.h.b16 %v121
  %v611 = vunpack.c.l.b16 %v122
  %v612 = vunpack.c.h.b16 %v122
  %v613 = vunpack.c.l.b16 %v123
  %v614 = vunpack.c.h.b16 %v123
  %v615 = vunpack.c.l.b16 %v124
  %v616 = vunpack.c.h.b16 %v124
  %v617 = vunpack.c.l.b16 %v125
  %v618 = vunpack.c.h.b16 %v125
  %v619 = vunpack.c.l.b16 %v126
  %v620 = vunpack.c.h.b16 %v126
  %v621 = vunpack.c.l.b16 %v127
  %v622 = vunpack.c.h.b16 %v127
  %v623 = vunpack.c.l.b16 %v128
  %v624 = vunpack.c.h.b16 %v128
  %v625 = vunpack.c.l.b16 %v129
  %v626 = vunpack.c.h.b16 %v129
  %v627 = vunpack.c.l.b16 %v130
  %v628 = vunpack.c.h.b16 %v130
  %v629 = vunpack.c.l.b16 %v131
  %v630 = vunpack.c.h.b16 %v131
  %v631 = vunpack.c.l.b16 %v132
  %v632 = vunpack.c.h.b16 %v132
  %v633 = vunpack.c.l.b16 %v133
  %v634 = vunpack.c.h.b16 %v133
  %v635 = vunpack.c.l.b16 %v134
  %v636 = vunpack.c.h.b16 %v134
  %v637 = vunpack.c.l.b16 %v135
  %v638 = vunpack.c.h.b16 %v135
  %v639 = vunpack.c.l.b16 %v136
  %v640 = vunpack.c.h.b16 %v136
  %v641 = vunpack.c.l.b16 %v137
  %v642 = vunpack.c.h.b16 %v137
  %v643 = vunpack.c.l.b16 %v138
  %v644 = vunpack.c.h.b16 %v138
  %v645 = vunpack.c.l.b16 %v139
  %v646 = vunpack.c.h.b16 %v139
  %v647 = vunpack.c.l.b16 %v140
  %v648 = vunpack.c.h.b16 %v140
  %v649 = vunpack.c.l.b16 %v141
  %v650 = vunpack.c.h.b16 %v141
  %v651 = vunpack.c.l.b16 %v142
  %v652 = vunpack.c.h.b16 %v142
  %v653 = vunpack.c.l.b16 %v143
  %v654 = vunpack.c.h.b16 %v143
  %v655 = vunpack.c.l.b16 %v144
  %v656 = vunpack.c.h.b16 %v144
  %v657 = vunpack.c.l.b16 %v145
  %v658 = vunpack.c.h.b16 %v145
  %v659 = vunpack.c.l.b16 %v146
  %v660 = vunpack.c.h.b16 %v146
  %v661 = vunpack.c.l.b16 %v147
  %v662 = vunpack.c.h.b16 %v147
  %v663 = vunpack.c.l.b16 %v148
  %v664 = vunpack.c.h.b16 %v148
  %v665 = vunpack.c.l.b16 %v149
  %v666 = vunpack.c.h.b16 %v149
  %v667 = vunpack.c.l.b16 %v150
  %v668 = vunpack.c.h.b16 %v150
  %v669 = vunpack.c.l.b16 %v151
  %v670 = vunpack.c.h.b16 %v151
  %v671 = vunpack.c.l.b16 %v152
  %v672 = vunpack.c.h.b16 %v152
  %v673 = vunpack.c.l.b16 %v153
  %v674 = vunpack.c.h.b16 %v153
  %v675 = vunpack.c.l.b16 %v154
  %v676 = vunpack.c.h.b16 %v154
  %v677 = vunpack.c.l.b16 %v155
  %v678 = vunpack.c.h.b16 %v155
  %v679 = vunpack.c.l.b16 %v156
  %v680 = vunpack.c.h.b16 %v156
  %v681 = vunpack.c.l.b16 %v157
  %v682 = vunpack.c.h.b16 %v157
  %v683 = vunpack.c.l.b16 %v158
  %v684 = vunpack.c.h.b16 %v158
  %v685 = vunpack.c.l.b16 %v159
  %v686 = vunpack.c.h.b16 %v159
  %v687 = vunpack.c.l.b16 %v160
  %v688 = vunpack.c.h.b16 %v160
  %v689 = vunpack.c.l.b16 %v161
  %v690 = vunpack.c.h.b16 %v161
  %v691 = vunpack.c.l.b16 %v162
  %v692 = vunpack.c.h.b16 %v162
  %v693 = vunpack.c.l.b16 %v163
  %v694 = vunpack.c.h.b16 %v163
  %v695 = vunpack.c.l.b16 %v164
  %v696 = vunpack.c.h.b16 %v164
  %v697 = vunpack.c.l.b16 %v165
  %v698 = vunpack.c.h.b16 %v165
  %v699 = vunpack.c.l.b16 %v166
  %v700 = vunpack.c.h.b16 %v166
  %v701 = vunpack.c.l.b16 %v167
  %v702 = vunpack.c.h.b16 %v167
  %v703 = vunpack.c.l.b16 %v168
  %v704 = vunpack.c.h.b16 %v168
  %v705 = vunpack.c.l.b16 %v169
  %v706 = vunpack.c.h.b16 %v169
  %v707 = vunpack.c.l.b16 %v170
  %v708 = vunpack.c.h.b16 %v170
  %v709 = vunpack.c.l.b16 %v171
  %v710 = vunpack.c.h.b16 %v171
  %v711 = vunpack.c.l.b16 %v172
  %v712 = vunpack.c.h.b16 %v172
  %v713 = vunpack.c.l.b16 %v173
  %v714 = vunpack.c.h.b16 %v173
  %v715 = vunpack.c.l.b16 %v174
  %v716 = vunpack.c.h.b16 %v174
  %v717 = vunpack.c.l.b16 %v175
  %v718 = vunpack.c.h.b16 %v175
  %v719 = vunpack.c.l.b16 %v176
  %v720 = vunpack.c.h.b16 %v176
  %v721 = vunpack.c.l.b16 %v177
  %v722 = vunpack.c.h.b16 %v177
  %v723 = vunpack.c.l.b16 %v178
  %v724 = vunpack.c.h.b16 %v178
  %v725 = vunpack.c.l.b16 %v179
  %v726 = vunpack.c.h.b16 %v179
  %v727 = vunpack.c.l.b16 %v180
  %v728 = vunpack.c.h.b16 %v180
  %v729 = vunpack.c.l.b16 %v181
  %v730 = vunpack.c.h.b16 %v181
  %v731 = vunpack.c.l.b16 %v182
  %v732 = vunpack.c.h.b16 %v182
  %v733 = vunpack.c.l.b16 %v183
  %v734 = vunpack.c.h.b16 %v183
  %v735 = vunpack.c.l.b16 %v184
  %v736 = vunpack.c.h.b16 %v184
  %v737 = vunpack.c.l.b16 %v185
  %v738 = vunpack.c.h.b16 %v185
  %v739 = vunpack.c.l.b16 %v186
  %v740 = vunpack.c.h.b16 %v186
  %v741 = vunpack.c.l.b16 %v187
  %v742 = vunpack.c.h.b16 %v187
  %v743 = vunpack.c.l.b16 %v188
  %v744 = vunpack.c.h.b16 %v188
  %v745 = vunpack.c.l.b16 %v189
  %v746 = vunpack.c.h.b16 %v189
  %v747 = vunpack.c.l.b16 %v190
  %v748 = vunpack.c.h.b16 %v190
  %v749 = vunpack.c.l.b16 %v191
  %v750 = vunpack.c.h.b16 %v191
  %v751 = vunpack.c.l.b16 %v192
  %v752 = vunpack.c.h.b16 %v192
  %v753 = vunpack.c.l.b16 %v193
  %v754 = vunpack.c.h.b16 %v193
  %v755 = vunpack.c.l.b16 %v194
  %v756 = vunpack.c.h.b16 %v194
  %v757 = vunpack.c.l.b16 %v195
  %v758 = vunpack.c.h.b16 %v195
  %v759 = vunpack.c.l.b16 %v196
  %v760 = vunpack.c.h.b16 %v196
  %v761 = vunpack.c.l.b16 %v197
  %v762 = vunpack.c.h.b16 %v197
  %v763 = vunpack.c.l.b16 %v198
  %v764 = vunpack.c.h.b16 %v198
  %v765 = vunpack.c.l.b16 %v199
  %v766 = vunpack.c.h.b16 %v199
  %v767 = vunpack.c.l.b16 %v200
  %v768 = vunpack.c.h.b16 %v200
  %v769 = vunpack.c.l.b16 %v201
  %v770 = vunpack.c.h.b16 %v201
  %v771 = vunpack.c.l.b16 %v202
  %v772 = vunpack.c.h.b16 %v202
  %v773 = vunpack.c.l.b16 %v203
  %v774 = vunpack.c.h.b16 %v203
  %v775 = vunpack.c.l.b16 %v204
  %v776 = vunpack.c.h.b16 %v204
  %v777 = vunpack.c.l.b16 %v205
  %v778 = vunpack.c.h.b16 %v205
  %v779 = vunpack.c.l.b16 %v206
  %v780 = vunpack.c.h.b16 %v206
  %v781 = vunpack.c.l.b16 %v207
  %v782 = vunpack.c.h.b16 %v207
  %v783 = vunpack.c.l.b16 %v208
  %v784 = vunpack.c.h.b16 %v208
  %v785 = vunpack.c.l.b16 %v209
  %v786 = vunpack.c.h.b16 %v209
  %v787 = vunpack.c.l.b16 %v210
  %v788 = vunpack.c.h.b16 %v210
  %v789 = vunpack.c.l.b16 %v211
  %v790 = vunpack.c.h.b16 %v211
  %v791 = vunpack.c.l.b16 %v212
  %v792 = vunpack.c.h.b16 %v212
  %v793 = vunpack.c.l.b16 %v213
  %v794 = vunpack.c.h.b16 %v213
  %v795 = vunpack.c.l.b16 %v214
  %v796 = vunpack.c.h.b16 %v214
  %v797 = vunpack.c.l.b16 %v215
  %v798 = vunpack.c.h.b16 %v215
  %v799 = vunpack.c.l.b16 %v216
  %v800 = vunpack.c.h.b16 %v216
  %v801 = vunpack.c.l.b16 %v217
  %v802 = vunpack.c.h.b16 %v217
  %v803 = vunpack.c.l.b16 %v218
  %v804 = vunpack.c.h.b16 %v218
  %v805 = vunpack.c.l.b16 %v219
  %v806 = vunpack.c.h.b16 %v219
  %v807 = vunpack.c.l.b16 %v220
  %v808 = vunpack.c.h.b16 %v220
  %v809 = vunpack.c.l.b16 %v221
  %v810 = vunpack.c.h.b16 %v221
  %v811 = vunpack.c.l.b16 %v222
  %v812 = vunpack.c.h.b16 %v222
  %v813 = vunpack.c.l.b16 %v223
  %v814 = vunpack.c.h.b16 %v223
  %v815 = vunpack.c.l.b16 %v224
  %v816 = vunpack.c.h.b16 %v224
  %v817 = vunpack.c.l.b16 %v225
  %v818 = vunpack.c.h.b16 %v225
  %v819 = vunpack.c.l.b16 %v226
  %v820 = vunpack.c.h.b16 %v226
  %v821 = vunpack.c.l.b16 %v227
  %v822 = vunpack.c.h.b16 %v227
  %v823 = vunpack.c.l.b16 %v228
  %v824 = vunpack.c.h.b16 %v228
  %v825 = vunpack.c.l.b16 %v229
  %v826 = vunpack.c.h.b16 %v229
  %v827 = vunpack.c.l.b16 %v230
  %v828 = vunpack.c.h.b16 %v230
  %v829 = vpack.c.b16 %v441, %v437
  %v830 = vpack.c.b16 %v442, %v438
  %v831 = vpack.c.b16 %v443, %v439
  %v832 = vpack.c.b16 %v444, %v440
  %v833 = vpack.c.b16 %v449, %v445
  %v834 = vpack.c.b16 %v450, %v446
  %v835 = vpack.c.b16 %v451, %v447
  %v836 = vpack.c.b16 %v452, %v448
  %v837 = vpack.c.b16 %v457, %v453
  %v838 = vpack.c.b16 %v458, %v454
  %v839 = vpack.c.b16 %v459, %v455
  %v840 = vpack.c.b16 %v460, %v456
  %v841 = vpack.c.b16 %v465, %v461
  %v842 = vpack.c.b16 %v466, %v462
  %v843 = vpack.c.b16 %v467, %v463
  %v844 = vpack.c.b16 %v468, %v464
  %v845 = vpack.c.b16 %v473, %v469
  %v846 = vpack.c.b16 %v474, %v470
  %v847 = vpack.c.b16 %v475, %v471
  %v848 = vpack.c.b16 %v476, %v472
  %v849 = vpack.c.b16 %v481, %v477
  %v850 = vpack.c.b16 %v482, %v478
  %v851 = vpack.c.b16 %v483, %v479
  %v852 = vpack.c.b16 %v484, %v480
  %v853 = vpack.c.b16 %v489, %v485
  %v854 = vpack.c.b16 %v490, %v486
  %v855 = vpack.c.b16 %v491, %v487
  %v856 = vpack.c.b16 %v492, %v488
  %v857 = vpack.c.b16 %v497, %v493
  %v858 = vpack.c.b16 %v498, %v494
  %v859 = vpack.c.b16 %v499, %v495
  %v860 = vpack.c.b16 %v500, %v496
  %v861 = vpack.c.b16 %v505, %v501
  %v862 = vpack.c.b16 %v506, %v502
  %v863 = vpack.c.b16 %v507, %v503
  %v864 = vpack.c.b16 %v508, %v504
  %v865 = vpack.c.b16 %v513, %v509
  %v866 = vpack.c.b16 %v514, %v510
  %v867 = vpack.c.b16 %v515, %v511
  %v868 = vpack.c.b16 %v516, %v512
  %v869 = vpack.c.b16 %v521, %v517
  %v870 = vpack.c.b16 %v522, %v518
  %v871 = vpack.c.b16 %v523, %v519
  %v872 = vpack.c.b16 %v524, %v520
  %v873 = vpack.c.b16 %v529, %v525
  %v874 = vpack.c.b16 %v530, %v526
  %v875 = vpack.c.b16 %v531, %v527
  %v876 = vpack.c.b16 %v532, %v528
  %v877 = vpack.c.b16 %v537, %v533
  %v878 = vpack.c.b16 %v538, %v534
  %v879 = vpack.c.b16 %v539, %v535
  %v880 = vpack.c.b16 %v540, %v536
  %v881 = vpack.c.b16 %v545, %v541
  %v882 = vpack.c.b16 %v546, %v542
  %v883 = vpack.c.b16 %v547, %v543
  %v884 = vpack.c.b16 %v548, %v544
  %v885 = vpack.c.b16 %v553, %v549
  %v886 = vpack.c.b16 %v554, %v550
  %v887 = vpack.c.b16 %v555, %v551
  %v888 = vpack.c.b16 %v556, %v552
  %v889 = vpack.c.b16 %v561, %v557
  %v890 = vpack.c.b16 %v562, %v558
  %v891 = vpack.c.b16 %v563, %v559
  %v892 = vpack.c.b16 %v564, %v560
  %v893 = vpack.c.b16 %v569, %v565
  %v894 = vpack.c.b16 %v570, %v566
  %v895 = vpack.c.b16 %v571, %v567
  %v896 = vpack.c.b16 %v572, %v568
  %v897 = vpack.c.b16 %v577, %v573
  %v898 = vpack.c.b16 %v578, %v574
  %v899 = vpack.c.b16 %v579, %v575
  %v900 = vpack.c.b16 %v580, %v576
  %v901 = vpack.c.b16 %v585, %v581
  %v902 = vpack.c.b16 %v586, %v582
  %v903 = vpack.c.b16 %v587, %v583
  %v904 = vpack.c.b16 %v588, %v584
  %v905 = vpack.c.b16 %v593, %v589
  %v906 = vpack.c.b16 %v594, %v590
  %v907 = vpack.c.b16 %v595, %v591
  %v908 = vpack.c.b16 %v596, %v592
  %v909 = vpack.c.b16 %v601, %v597
  %v910 = vpack.c.b16 %v602, %v598
  %v911 = vpack.c.b16 %v603, %v599
  %v912 = vpack.c.b16 %v604, %v600
  %v913 = vpack.c.b16 %v609, %v605
  %v914 = vpack.c.b16 %v610, %v606
  %v915 = vpack.c.b16 %v611, %v607
  %v916 = vpack.c.b16 %v612, %v608
  %v917 = vpack.c.b16 %v617, %v613
  %v918 = vpack.c.b16 %v618, %v614
  %v919 = vpack.c.b16 %v619, %v615
  %v920 = vpack.c.b16 %v620, %v616
  %v921 = vpack.c.b16 %v625, %v621
  %v922 = vpack.c.b16 %v626, %v622
  %v923 = vpack.c.b16 %v627, %v623
  %v924 = vpack.c.b16 %v628, %v624
  %v925 = vpack.c.b16 %v633, %v629
  %v926 = vpack.c.b16 %v634, %v630
  %v927 = vpack.c.b16 %v635, %v631
  %v928 = vpack.c.b16 %v636, %v632
  %v929 = vpack.c.b16 %v641, %v637
  %v930 = vpack.c.b16 %v642, %v638
  %v931 = vpack.c.b16 %v643, %v639
  %v932 = vpack.c.b16 %v644, %v640
  %v933 = vpack.c.b16 %v649, %v645
  %v934 = vpack.c.b16 %v650, %v646
  %v935 = vpack.c.b16 %v651, %v647
  %v936 = vpack.c.b16 %v652, %v648
  %v937 = vpack.c.b16 %v657, %v653
  %v938 = vpack.c.b16 %v658, %v654
  %v939 = vpack.c.b16 %v659, %v655
  %v940 = vpack.c.b16 %v660, %v656
  %v941 = vpack.c.b16 %v665, %v661
  %v942 = vpack.c.b16 %v666, %v662
  %v943 = vpack.c.b16 %v667, %v663
  %v944 = vpack.c.b16 %v668, %v664
  %v945 = vpack.c.b16 %v673, %v669
  %v946 = vpack.c.b16 %v674, %v670
  %v947 = vpack.c.b16 %v675, %v671
  %v948 = vpack.c.b16 %v676, %v672
  %v949 = vpack.c.b16 %v681, %v677
  %v950 = vpack.c.b16 %v682, %v678
  %v951 = vpack.c.b16 %v683, %v679
  %v952 = vpack.c.b16 %v684, %v680
  %v953 = vpack.c.b16 %v689, %v685
  %v954 = vpack.c.b16 %v690, %v686
  %v955 = vpack.c.b16 %v691, %v687
  %v956 = vpack.c.b16 %v692, %v688
  %v957 = vpack.c.b16 %v697, %v693
  %v958 = vpack.c.b16 %v698, %v694
  %v959 = vpack.c.b16 %v699, %v695
  %v960 = vpack.c.b16 %v700, %v696
  %v961 = vpack.c.b16 %v705, %v701
  %v962 = vpack.c.b16 %v706, %v702
  %v963 = vpack.c.b16 %v707, %v703
  %v964 = vpack.c.b16 %v708, %v704
  %v965 = vpack.c.b16 %v713, %v709
  %v966 = vpack.c.b16 %v714, %v710
  %v967 = vpack.c.b16 %v715, %v711
  %v968 = vpack.c.b16 %v716, %v712
  %v969 = vpack.c.b16 %v721, %v717
  %v970 = vpack.c.b16 %v722, %v718
  %v971 = vpack.c.b16 %v723, %v719
  %v972 = vpack.c.b16 %v724, %v720
  %v973 = vpack.c.b16 %v729, %v725
  %v974 = vpack.c.b16 %v730, %v726
  %v975 = vpack.c.b16 %v731, %v727
  %v976 = vpack.c.b16 %v732, %v728
  %v977 = vpack.c.b16 %v737, %v733
  %v978 = vpack.c.b16 %v738, %v734
  %v979 = vpack.c.b16 %v739, %v735
  %v980 = vpack.c.b16 %v740, %v736
  %v981 = vpack.c.b16 %v745, %v741
  %v982 = vpack.c.b16 %v746, %v742
  %v983 = vpack.c.b16 %v747, %v743
  %v984 = vpack.c.b16 %v748, %v744
  %v985 = vpack.c.b16 %v753, %v749
  %v986 = vpack.c.b16 %v754, %v750
  %v987 = vpack.c.b16 %v755, %v751
  %v988 = vpack.c.b16 %v756, %v752
  %v989 = vpack.c.b16 %v761, %v757
  %v990 = vpack.c.b16 %v762, %v758
  %v991 = vpack.c.b16 %v763, %v759
  %v992 = vpack.c.b16 %v764, %v760
  %v993 = vpack.c.b16 %v769, %v765
  %v994 = vpack.c.b16 %v770, %v766
  %v995 = vpack.c.b16 %v771, %v767
  %v996 = vpack.c.b16 %v772, %v768
  %v997 = vpack.c.b16 %v777, %v773
  %v998 = vpack.c.b16 %v778, %v774
  %v999 = vpack.c.b16 %v779, %v775
  %v1000 = vpack.c.b16 %v780, %v776
  %v1001 = vpack.c.b16 %v785, %v781
  %v1002 = vpack.c.b16 %v786, %v782
  %v1003 = vpack.c.b16 %v787, %v783
  %v1004 = vpack.c.b16 %v788, %v784
  %v1005 = vpack.c.b16 %v793, %v789
  %v1006 = vpack.c.b16 %v794, %v790
  %v1007 = vpack.c.b16 %v795, %v791
  %v1008 = vpack.c.b16 %v796, %v792
  %v1009 = vpack.c.b16 %v801, %v797
  %v1010 = vpack.c.b16 %v802, %v798
  %v1011 = vpack.c.b16 %v803, %v799
  %v1012 = vpack.c.b16 %v804, %v800
  %v1013 = vpack.c.b16 %v809, %v805
  %v1014 = vpack.c.b16 %v810, %v806
  %v1015 = vpack.c.b16 %v811, %v807
  %v1016 = vpack.c.b16 %v812, %v808
  %v1017 = vpack.c.b16 %v817, %v813
  %v1018 = vpack.c.b16 %v818, %v814
  %v1019 = vpack.c.b16 %v819, %v815
  %v1020 = vpack.c.b16 %v820, %v816
  %v1021 = vpack.c.b16 %v825, %v821
  %v1022 = vpack.c.b16 %v826, %v822
  %v1023 = vpack.c.b16 %v827, %v823
  %v1024 = vpack.c.b16 %v828, %v824
  %vm1221 = vcmask 130048
  %v1223 = vsel %vm1221, %v34, 0
  %1225 = vmatpush.bf16.msra.mxu0 %v857
  %1226 = vmatpush.bf16.msra.mxu0 %v853
  %1227 = vmatpush.bf16.msra.mxu0 %v849
  %1228 = vmatpush.bf16.msra.mxu0 %v845
  %1229 = vmatpush.bf16.msra.mxu0 %v841
  %1230 = vmatpush.bf16.msra.mxu0 %v837
  %1231 = vmatpush.bf16.msra.mxu0 %v833
  %1232 = vmatpush.bf16.msra.mxu0 %v829
  %1233 = vmatmul.bf16.gmra.mxu0 %v28
  %v1234 = vpop.f32.mrf.mxu0
  %v1235 = vadd.f32 %v233, %v1234
  %v1236 = vpop.f32.mrf.mxu0
  %1237 = vdwg.mxu0
  %1238 = vmatpush.bf16.msra.mxu0 %v889
  %1239 = vmatpush.bf16.msra.mxu0 %v885
  %1240 = vmatpush.bf16.msra.mxu0 %v881
  %1241 = vmatpush.bf16.msra.mxu0 %v877
  %1242 = vmatpush.bf16.msra.mxu0 %v873
  %1243 = vmatpush.bf16.msra.mxu0 %v869
  %1244 = vmatpush.bf16.msra.mxu0 %v865
  %1245 = vmatpush.bf16.msra.mxu0 %v861
  %1246 = vmatmul.bf16.gmra.mxu0 %v29
  %v1247 = vpop.f32.mrf.mxu0
  %v1248 = vadd.f32 %v1235, %v1247
  %v1249 = vpop.f32.mrf.mxu0
  %1250 = vdwg.mxu0
  %1251 = vmatpush.bf16.msra.mxu0 %v921
  %1252 = vmatpush.bf16.msra.mxu0 %v917
  %1253 = vmatpush.bf16.msra.mxu0 %v913
  %1254 = vmatpush.bf16.msra.mxu0 %v909
  %1255 = vmatpush.bf16.msra.mxu0 %v905
  %1256 = vmatpush.bf16.msra.mxu0 %v901
  %1257 = vmatpush.bf16.msra.mxu0 %v897
  %1258 = vmatpush.bf16.msra.mxu0 %v893
  %1259 = vmatmul.bf16.gmra.mxu0 %v30
  %v1260 = vpop.f32.mrf.mxu0
  %v1261 = vadd.f32 %v1248, %v1260
  %v1262 = vpop.f32.mrf.mxu0
  %1263 = vdwg.mxu0
  %1264 = vmatpush.bf16.msra.mxu0 %v953
  %1265 = vmatpush.bf16.msra.mxu0 %v949
  %1266 = vmatpush.bf16.msra.mxu0 %v945
  %1267 = vmatpush.bf16.msra.mxu0 %v941
  %1268 = vmatpush.bf16.msra.mxu0 %v937
  %1269 = vmatpush.bf16.msra.mxu0 %v933
  %1270 = vmatpush.bf16.msra.mxu0 %v929
  %1271 = vmatpush.bf16.msra.mxu0 %v925
  %1272 = vmatmul.bf16.gmra.mxu0 %v31
  %v1273 = vpop.f32.mrf.mxu0
  %v1274 = vadd.f32 %v1261, %v1273
  %v1275 = vpop.f32.mrf.mxu0
  %1276 = vdwg.mxu0
  %1277 = vmatpush.bf16.msra.mxu0 %v985
  %1278 = vmatpush.bf16.msra.mxu0 %v981
  %1279 = vmatpush.bf16.msra.mxu0 %v977
  %1280 = vmatpush.bf16.msra.mxu0 %v973
  %1281 = vmatpush.bf16.msra.mxu0 %v969
  %1282 = vmatpush.bf16.msra.mxu0 %v965
  %1283 = vmatpush.bf16.msra.mxu0 %v961
  %1284 = vmatpush.bf16.msra.mxu0 %v957
  %1285 = vmatmul.bf16.gmra.mxu0 %v32
  %v1286 = vpop.f32.mrf.mxu0
  %v1287 = vadd.f32 %v1274, %v1286
  %v1288 = vpop.f32.mrf.mxu0
  %1289 = vdwg.mxu0
  %1290 = vmatpush.bf16.msra.mxu0 %v1017
  %1291 = vmatpush.bf16.msra.mxu0 %v1013
  %1292 = vmatpush.bf16.msra.mxu0 %v1009
  %1293 = vmatpush.bf16.msra.mxu0 %v1005
  %1294 = vmatpush.bf16.msra.mxu0 %v1001
  %1295 = vmatpush.bf16.msra.mxu0 %v997
  %1296 = vmatpush.bf16.msra.mxu0 %v993
  %1297 = vmatpush.bf16.msra.mxu0 %v989
  %1298 = vmatmul.bf16.gmra.mxu0 %v33
  %v1299 = vpop.f32.mrf.mxu0
  %v1300 = vadd.f32 %v1287, %v1299
  %v1301 = vpop.f32.mrf.mxu0
  %1302 = vdwg.mxu0
  %1303 = vmatpush.bf16.msra.mxu0 0
  %1304 = vmatpush.bf16.msra.mxu0 0
  %1305 = vmatpush.bf16.msra.mxu0 0
  %1306 = vmatpush.bf16.msra.mxu0 0
  %1307 = vmatpush.bf16.msra.mxu0 0
  %1308 = vmatpush.bf16.msra.mxu0 0
  %1309 = vmatpush.bf16.msra.mxu0 0
  %1310 = vmatpush.bf16.msra.mxu0 %v1021
  %1311 = vmatmul.bf16.gmra.mxu0 %v1223
  %v1312 = vpop.f32.mrf.mxu0
  %v1313 = vadd.f32 %v1300, %v1312
  %v1314 = vpop.f32.mrf.mxu0
  %1315 = vdwg.mxu0
  %1316 = vmatpush.bf16.msra.mxu0 %v858
  %1317 = vmatpush.bf16.msra.mxu0 %v854
  %1318 = vmatpush.bf16.msra.mxu0 %v850
  %1319 = vmatpush.bf16.msra.mxu0 %v846
  %1320 = vmatpush.bf16.msra.mxu0 %v842
  %1321 = vmatpush.bf16.msra.mxu0 %v838
  %1322 = vmatpush.bf16.msra.mxu0 %v834
  %1323 = vmatpush.bf16.msra.mxu0 %v830
  %1324 = vmatmul.bf16.gmra.mxu0 %v28
  %v1325 = vpop.f32.mrf.mxu0
  %v1326 = vadd.f32 %v234, %v1325
  %v1327 = vpop.f32.mrf.mxu0
  %1328 = vdwg.mxu0
  %1329 = vmatpush.bf16.msra.mxu0 %v890
  %1330 = vmatpush.bf16.msra.mxu0 %v886
  %1331 = vmatpush.bf16.msra.mxu0 %v882
  %1332 = vmatpush.bf16.msra.mxu0 %v878
  %1333 = vmatpush.bf16.msra.mxu0 %v874
  %1334 = vmatpush.bf16.msra.mxu0 %v870
  %1335 = vmatpush.bf16.msra.mxu0 %v866
  %1336 = vmatpush.bf16.msra.mxu0 %v862
  %1337 = vmatmul.bf16.gmra.mxu0 %v29
  %v1338 = vpop.f32.mrf.mxu0
  %v1339 = vadd.f32 %v1326, %v1338
  %v1340 = vpop.f32.mrf.mxu0
  %1341 = vdwg.mxu0
  %1342 = vmatpush.bf16.msra.mxu0 %v922
  %1343 = vmatpush.bf16.msra.mxu0 %v918
  %1344 = vmatpush.bf16.msra.mxu0 %v914
  %1345 = vmatpush.bf16.msra.mxu0 %v910
  %1346 = vmatpush.bf16.msra.mxu0 %v906
  %1347 = vmatpush.bf16.msra.mxu0 %v902
  %1348 = vmatpush.bf16.msra.mxu0 %v898
  %1349 = vmatpush.bf16.msra.mxu0 %v894
  %1350 = vmatmul.bf16.gmra.mxu0 %v30
  %v1351 = vpop.f32.mrf.mxu0
  %v1352 = vadd.f32 %v1339, %v1351
  %v1353 = vpop.f32.mrf.mxu0
  %1354 = vdwg.mxu0
  %1355 = vmatpush.bf16.msra.mxu0 %v954
  %1356 = vmatpush.bf16.msra.mxu0 %v950
  %1357 = vmatpush.bf16.msra.mxu0 %v946
  %1358 = vmatpush.bf16.msra.mxu0 %v942
  %1359 = vmatpush.bf16.msra.mxu0 %v938
  %1360 = vmatpush.bf16.msra.mxu0 %v934
  %1361 = vmatpush.bf16.msra.mxu0 %v930
  %1362 = vmatpush.bf16.msra.mxu0 %v926
  %1363 = vmatmul.bf16.gmra.mxu0 %v31
  %v1364 = vpop.f32.mrf.mxu0
  %v1365 = vadd.f32 %v1352, %v1364
  %v1366 = vpop.f32.mrf.mxu0
  %1367 = vdwg.mxu0
  %1368 = vmatpush.bf16.msra.mxu0 %v986
  %1369 = vmatpush.bf16.msra.mxu0 %v982
  %1370 = vmatpush.bf16.msra.mxu0 %v978
  %1371 = vmatpush.bf16.msra.mxu0 %v974
  %1372 = vmatpush.bf16.msra.mxu0 %v970
  %1373 = vmatpush.bf16.msra.mxu0 %v966
  %1374 = vmatpush.bf16.msra.mxu0 %v962
  %1375 = vmatpush.bf16.msra.mxu0 %v958
  %1376 = vmatmul.bf16.gmra.mxu0 %v32
  %v1377 = vpop.f32.mrf.mxu0
  %v1378 = vadd.f32 %v1365, %v1377
  %v1379 = vpop.f32.mrf.mxu0
  %1380 = vdwg.mxu0
  %1381 = vmatpush.bf16.msra.mxu0 %v1018
  %1382 = vmatpush.bf16.msra.mxu0 %v1014
  %1383 = vmatpush.bf16.msra.mxu0 %v1010
  %1384 = vmatpush.bf16.msra.mxu0 %v1006
  %1385 = vmatpush.bf16.msra.mxu0 %v1002
  %1386 = vmatpush.bf16.msra.mxu0 %v998
  %1387 = vmatpush.bf16.msra.mxu0 %v994
  %1388 = vmatpush.bf16.msra.mxu0 %v990
  %1389 = vmatmul.bf16.gmra.mxu0 %v33
  %v1390 = vpop.f32.mrf.mxu0
  %v1391 = vadd.f32 %v1378, %v1390
  %v1392 = vpop.f32.mrf.mxu0
  %1393 = vdwg.mxu0
  %1394 = vmatpush.bf16.msra.mxu0 0
  %1395 = vmatpush.bf16.msra.mxu0 0
  %1396 = vmatpush.bf16.msra.mxu0 0
  %1397 = vmatpush.bf16.msra.mxu0 0
  %1398 = vmatpush.bf16.msra.mxu0 0
  %1399 = vmatpush.bf16.msra.mxu0 0
  %1400 = vmatpush.bf16.msra.mxu0 0
  %1401 = vmatpush.bf16.msra.mxu0 %v1022
  %1402 = vmatmul.bf16.gmra.mxu0 %v1223
  %v1403 = vpop.f32.mrf.mxu0
  %v1404 = vadd.f32 %v1391, %v1403
  %v1405 = vpop.f32.mrf.mxu0
  %1406 = vdwg.mxu0
  %1407 = vmatpush.bf16.msra.mxu0 %v859
  %1408 = vmatpush.bf16.msra.mxu0 %v855
  %1409 = vmatpush.bf16.msra.mxu0 %v851
  %1410 = vmatpush.bf16.msra.mxu0 %v847
  %1411 = vmatpush.bf16.msra.mxu0 %v843
  %1412 = vmatpush.bf16.msra.mxu0 %v839
  %1413 = vmatpush.bf16.msra.mxu0 %v835
  %1414 = vmatpush.bf16.msra.mxu0 %v831
  %1415 = vmatmul.bf16.gmra.mxu0 %v28
  %v1416 = vpop.f32.mrf.mxu0
  %v1417 = vadd.f32 %v235, %v1416
  %v1418 = vpop.f32.mrf.mxu0
  %1419 = vdwg.mxu0
  %1420 = vmatpush.bf16.msra.mxu0 %v891
  %1421 = vmatpush.bf16.msra.mxu0 %v887
  %1422 = vmatpush.bf16.msra.mxu0 %v883
  %1423 = vmatpush.bf16.msra.mxu0 %v879
  %1424 = vmatpush.bf16.msra.mxu0 %v875
  %1425 = vmatpush.bf16.msra.mxu0 %v871
  %1426 = vmatpush.bf16.msra.mxu0 %v867
  %1427 = vmatpush.bf16.msra.mxu0 %v863
  %1428 = vmatmul.bf16.gmra.mxu0 %v29
  %v1429 = vpop.f32.mrf.mxu0
  %v1430 = vadd.f32 %v1417, %v1429
  %v1431 = vpop.f32.mrf.mxu0
  %1432 = vdwg.mxu0
  %1433 = vmatpush.bf16.msra.mxu0 %v923
  %1434 = vmatpush.bf16.msra.mxu0 %v919
  %1435 = vmatpush.bf16.msra.mxu0 %v915
  %1436 = vmatpush.bf16.msra.mxu0 %v911
  %1437 = vmatpush.bf16.msra.mxu0 %v907
  %1438 = vmatpush.bf16.msra.mxu0 %v903
  %1439 = vmatpush.bf16.msra.mxu0 %v899
  %1440 = vmatpush.bf16.msra.mxu0 %v895
  %1441 = vmatmul.bf16.gmra.mxu0 %v30
  %v1442 = vpop.f32.mrf.mxu0
  %v1443 = vadd.f32 %v1430, %v1442
  %v1444 = vpop.f32.mrf.mxu0
  %1445 = vdwg.mxu0
  %1446 = vmatpush.bf16.msra.mxu0 %v955
  %1447 = vmatpush.bf16.msra.mxu0 %v951
  %1448 = vmatpush.bf16.msra.mxu0 %v947
  %1449 = vmatpush.bf16.msra.mxu0 %v943
  %1450 = vmatpush.bf16.msra.mxu0 %v939
  %1451 = vmatpush.bf16.msra.mxu0 %v935
  %1452 = vmatpush.bf16.msra.mxu0 %v931
  %1453 = vmatpush.bf16.msra.mxu0 %v927
  %1454 = vmatmul.bf16.gmra.mxu0 %v31
  %v1455 = vpop.f32.mrf.mxu0
  %v1456 = vadd.f32 %v1443, %v1455
  %v1457 = vpop.f32.mrf.mxu0
  %1458 = vdwg.mxu0
  %1459 = vmatpush.bf16.msra.mxu0 %v987
  %1460 = vmatpush.bf16.msra.mxu0 %v983
  %1461 = vmatpush.bf16.msra.mxu0 %v979
  %1462 = vmatpush.bf16.msra.mxu0 %v975
  %1463 = vmatpush.bf16.msra.mxu0 %v971
  %1464 = vmatpush.bf16.msra.mxu0 %v967
  %1465 = vmatpush.bf16.msra.mxu0 %v963
  %1466 = vmatpush.bf16.msra.mxu0 %v959
  %1467 = vmatmul.bf16.gmra.mxu0 %v32
  %v1468 = vpop.f32.mrf.mxu0
  %v1469 = vadd.f32 %v1456, %v1468
  %v1470 = vpop.f32.mrf.mxu0
  %1471 = vdwg.mxu0
  %1472 = vmatpush.bf16.msra.mxu0 %v1019
  %1473 = vmatpush.bf16.msra.mxu0 %v1015
  %1474 = vmatpush.bf16.msra.mxu0 %v1011
  %1475 = vmatpush.bf16.msra.mxu0 %v1007
  %1476 = vmatpush.bf16.msra.mxu0 %v1003
  %1477 = vmatpush.bf16.msra.mxu0 %v999
  %1478 = vmatpush.bf16.msra.mxu0 %v995
  %1479 = vmatpush.bf16.msra.mxu0 %v991
  %1480 = vmatmul.bf16.gmra.mxu0 %v33
  %v1481 = vpop.f32.mrf.mxu0
  %v1482 = vadd.f32 %v1469, %v1481
  %v1483 = vpop.f32.mrf.mxu0
  %1484 = vdwg.mxu0
  %1485 = vmatpush.bf16.msra.mxu0 0
  %1486 = vmatpush.bf16.msra.mxu0 0
  %1487 = vmatpush.bf16.msra.mxu0 0
  %1488 = vmatpush.bf16.msra.mxu0 0
  %1489 = vmatpush.bf16.msra.mxu0 0
  %1490 = vmatpush.bf16.msra.mxu0 0
  %1491 = vmatpush.bf16.msra.mxu0 0
  %1492 = vmatpush.bf16.msra.mxu0 %v1023
  %1493 = vmatmul.bf16.gmra.mxu0 %v1223
  %v1494 = vpop.f32.mrf.mxu0
  %v1495 = vadd.f32 %v1482, %v1494
  %v1496 = vpop.f32.mrf.mxu0
  %1497 = vdwg.mxu0
  %1498 = vmatpush.bf16.msra.mxu0 %v860
  %1499 = vmatpush.bf16.msra.mxu0 %v856
  %1500 = vmatpush.bf16.msra.mxu0 %v852
  %1501 = vmatpush.bf16.msra.mxu0 %v848
  %1502 = vmatpush.bf16.msra.mxu0 %v844
  %1503 = vmatpush.bf16.msra.mxu0 %v840
  %1504 = vmatpush.bf16.msra.mxu0 %v836
  %1505 = vmatpush.bf16.msra.mxu0 %v832
  %1506 = vmatmul.bf16.gmra.mxu0 %v28
  %v1507 = vpop.f32.mrf.mxu0
  %v1508 = vadd.f32 %v236, %v1507
  %v1509 = vpop.f32.mrf.mxu0
  %1510 = vdwg.mxu0
  %1511 = vmatpush.bf16.msra.mxu0 %v892
  %1512 = vmatpush.bf16.msra.mxu0 %v888
  %1513 = vmatpush.bf16.msra.mxu0 %v884
  %1514 = vmatpush.bf16.msra.mxu0 %v880
  %1515 = vmatpush.bf16.msra.mxu0 %v876
  %1516 = vmatpush.bf16.msra.mxu0 %v872
  %1517 = vmatpush.bf16.msra.mxu0 %v868
  %1518 = vmatpush.bf16.msra.mxu0 %v864
  %1519 = vmatmul.bf16.gmra.mxu0 %v29
  %v1520 = vpop.f32.mrf.mxu0
  %v1521 = vadd.f32 %v1508, %v1520
  %v1522 = vpop.f32.mrf.mxu0
  %1523 = vdwg.mxu0
  %1524 = vmatpush.bf16.msra.mxu0 %v924
  %1525 = vmatpush.bf16.msra.mxu0 %v920
  %1526 = vmatpush.bf16.msra.mxu0 %v916
  %1527 = vmatpush.bf16.msra.mxu0 %v912
  %1528 = vmatpush.bf16.msra.mxu0 %v908
  %1529 = vmatpush.bf16.msra.mxu0 %v904
  %1530 = vmatpush.bf16.msra.mxu0 %v900
  %1531 = vmatpush.bf16.msra.mxu0 %v896
  %1532 = vmatmul.bf16.gmra.mxu0 %v30
  %v1533 = vpop.f32.mrf.mxu0
  %v1534 = vadd.f32 %v1521, %v1533
  %v1535 = vpop.f32.mrf.mxu0
  %1536 = vdwg.mxu0
  %1537 = vmatpush.bf16.msra.mxu0 %v956
  %1538 = vmatpush.bf16.msra.mxu0 %v952
  %1539 = vmatpush.bf16.msra.mxu0 %v948
  %1540 = vmatpush.bf16.msra.mxu0 %v944
  %1541 = vmatpush.bf16.msra.mxu0 %v940
  %1542 = vmatpush.bf16.msra.mxu0 %v936
  %1543 = vmatpush.bf16.msra.mxu0 %v932
  %1544 = vmatpush.bf16.msra.mxu0 %v928
  %1545 = vmatmul.bf16.gmra.mxu0 %v31
  %v1546 = vpop.f32.mrf.mxu0
  %v1547 = vadd.f32 %v1534, %v1546
  %v1548 = vpop.f32.mrf.mxu0
  %1549 = vdwg.mxu0
  %1550 = vmatpush.bf16.msra.mxu0 %v988
  %1551 = vmatpush.bf16.msra.mxu0 %v984
  %1552 = vmatpush.bf16.msra.mxu0 %v980
  %1553 = vmatpush.bf16.msra.mxu0 %v976
  %1554 = vmatpush.bf16.msra.mxu0 %v972
  %1555 = vmatpush.bf16.msra.mxu0 %v968
  %1556 = vmatpush.bf16.msra.mxu0 %v964
  %1557 = vmatpush.bf16.msra.mxu0 %v960
  %1558 = vmatmul.bf16.gmra.mxu0 %v32
  %v1559 = vpop.f32.mrf.mxu0
  %v1560 = vadd.f32 %v1547, %v1559
  %v1561 = vpop.f32.mrf.mxu0
  %1562 = vdwg.mxu0
  %1563 = vmatpush.bf16.msra.mxu0 %v1020
  %1564 = vmatpush.bf16.msra.mxu0 %v1016
  %1565 = vmatpush.bf16.msra.mxu0 %v1012
  %1566 = vmatpush.bf16.msra.mxu0 %v1008
  %1567 = vmatpush.bf16.msra.mxu0 %v1004
  %1568 = vmatpush.bf16.msra.mxu0 %v1000
  %1569 = vmatpush.bf16.msra.mxu0 %v996
  %1570 = vmatpush.bf16.msra.mxu0 %v992
  %1571 = vmatmul.bf16.gmra.mxu0 %v33
  %v1572 = vpop.f32.mrf.mxu0
  %v1573 = vadd.f32 %v1560, %v1572
  %v1574 = vpop.f32.mrf.mxu0
  %1575 = vdwg.mxu0
  %1576 = vmatpush.bf16.msra.mxu0 0
  %1577 = vmatpush.bf16.msra.mxu0 0
  %1578 = vmatpush.bf16.msra.mxu0 0
  %1579 = vmatpush.bf16.msra.mxu0 0
  %1580 = vmatpush.bf16.msra.mxu0 0
  %1581 = vmatpush.bf16.msra.mxu0 0
  %1582 = vmatpush.bf16.msra.mxu0 0
  %1583 = vmatpush.bf16.msra.mxu0 %v1024
  %1584 = vmatmul.bf16.gmra.mxu0 %v1223
  %v1585 = vpop.f32.mrf.mxu0
  %v1586 = vadd.f32 %v1573, %v1585
  %v1587 = vpop.f32.mrf.mxu0
  %1588 = vdwg.mxu0
  %v1589 = vmax.f32 %v1313, 0.0
  %v1590 = vmax.f32 %v1404, 0.0
  %v1591 = vmax.f32 %v1495, 0.0
  %v1592 = vmax.f32 %v1586, 0.0
  %v1593 = vpack.c.bf16 %v1589, %v1589
  %v1594 = vpack.c.bf16 %v1590, %v1590
  %v1595 = vpack.c.bf16 %v1591, %v1591
  %v1596 = vpack.c.bf16 %v1592, %v1592
  %v1597 = vld [vmem:[%s3] sm:$0xf]
  %v1598 = vld [vmem:[%s3 + $0x4] sm:$0xf]
  %v1599 = vld [vmem:[%s3 + $0x8] sm:$0xf]
  %v1600 = vld [vmem:[%s3 + $0xc] sm:$0xf]
  %v1601 = vld [vmem:[%s3 + $0x10] sm:$0xf]
  %v1602 = vld [vmem:[%s3 + $0x14] sm:$0xf]
  %v1603 = vld [vmem:[%s3 + $0x18] sm:$0xf]
  %v1604 = vld [vmem:[%s3 + $0x1c] sm:$0xf]
  %v1605 = vld [vmem:[%s3 + $0x20] sm:$0xf]
  %v1606 = vld [vmem:[%s3 + $0x24] sm:$0xf]
  %v1607 = vld [vmem:[%s3 + $0x28] sm:$0xf]
  %v1608 = vld [vmem:[%s3 + $0x2c] sm:$0xf]
  %v1609 = vld [vmem:[%s3 + $0x30] sm:$0xf]
  %v1610 = vld [vmem:[%s3 + $0x34] sm:$0xf]
  %v1611 = vld [vmem:[%s3 + $0x38] sm:$0xf]
  %v1612 = vld [vmem:[%s3 + $0x3c] sm:$0xf]
  %v1613 = vld [vmem:[%s3 + $0x40] sm:$0xf]
  %v1614 = vld [vmem:[%s3 + $0x44] sm:$0xf]
  %v1615 = vld [vmem:[%s3 + $0x48] sm:$0xf]
  %v1616 = vld [vmem:[%s3 + $0x4c] sm:$0xf]
  %v1617 = vld [vmem:[%s3 + $0x50] sm:$0xf]
  %v1618 = vld [vmem:[%s3 + $0x54] sm:$0xf]
  %v1619 = vld [vmem:[%s3 + $0x58] sm:$0xf]
  %v1620 = vld [vmem:[%s3 + $0x5c] sm:$0xf]
  %v1621 = vld [vmem:[%s3 + $0x60] sm:$0xf]
  %v1622 = vld [vmem:[%s3 + $0x64] sm:$0xf]
  %v1623 = vld [vmem:[%s3 + $0x68] sm:$0xf]
  %v1624 = vld [vmem:[%s3 + $0x6c] sm:$0xf]
  %v1625 = vld [vmem:[%s3 + $0x70] sm:$0xf]
  %v1626 = vld [vmem:[%s3 + $0x74] sm:$0xf]
  %v1627 = vld [vmem:[%s3 + $0x78] sm:$0xf]
  %v1628 = vld [vmem:[%s3 + $0x7c] sm:$0xf]
  %v1629 = vld [vmem:[%s3 + $0x80] sm:$0xf]
  %v1630 = vld [vmem:[%s3 + $0x84] sm:$0xf]
  %v1631 = vld [vmem:[%s3 + $0x88] sm:$0xf]
  %v1632 = vld [vmem:[%s3 + $0x8c] sm:$0xf]
  %v1633 = vld [vmem:[%s3 + $0x90] sm:$0xf]
  %v1634 = vld [vmem:[%s3 + $0x94] sm:$0xf]
  %v1635 = vld [vmem:[%s3 + $0x98] sm:$0xf]
  %v1636 = vld [vmem:[%s3 + $0x9c] sm:$0xf]
  %v1637 = vld [vmem:[%s3 + $0xa0] sm:$0xf]
  %v1638 = vld [vmem:[%s3 + $0xa4] sm:$0xf]
  %v1639 = vld [vmem:[%s3 + $0xa8] sm:$0xf]
  %v1640 = vld [vmem:[%s3 + $0xac] sm:$0xf]
  %v1641 = vld [vmem:[%s3 + $0xb0] sm:$0xf]
  %v1642 = vld [vmem:[%s3 + $0xb4] sm:$0xf]
  %v1643 = vld [vmem:[%s3 + $0xb8] sm:$0xf]
  %v1644 = vld [vmem:[%s3 + $0xbc] sm:$0xf]
  %v1645 = vld [vmem:[%s3 + $0xc0] sm:$0xf]
  %v1646 = vld [vmem:[%s3 + $0xc4] sm:$0xf]
  %v1647 = vld [vmem:[%s3 + $0xc8] sm:$0xf]
  %v1648 = vld [vmem:[%s3 + $0xcc] sm:$0xf]
  %v1649 = vld [vmem:[%s3 + $0xd0] sm:$0xf]
  %v1650 = vld [vmem:[%s3 + $0xd4] sm:$0xf]
  %v1651 = vld [vmem:[%s3 + $0xd8] sm:$0xf]
  %v1652 = vld [vmem:[%s3 + $0xdc] sm:$0xf]
  %v1653 = vld [vmem:[%s3 + $0xe0] sm:$0xf]
  %v1654 = vld [vmem:[%s3 + $0xe4] sm:$0xf]
  %v1655 = vld [vmem:[%s3 + $0xe8] sm:$0xf]
  %v1656 = vld [vmem:[%s3 + $0xec] sm:$0xf]
  %v1657 = vld [vmem:[%s3 + $0xf0] sm:$0xf]
  %v1658 = vld [vmem:[%s3 + $0xf4] sm:$0xf]
  %v1659 = vld [vmem:[%s3 + $0xf8] sm:$0xf]
  %v1660 = vld [vmem:[%s3 + $0xfc] sm:$0xf]
  %v1661 = vld [vmem:[%s4] sm:$0x1]
  %v1663 = vperm.slane %v1661, 0
  %v1729 = vunpack.c.l.b16 %v1597
  %v1730 = vunpack.c.l.b16 %v1598
  %v1731 = vunpack.c.l.b16 %v1599
  %v1732 = vunpack.c.l.b16 %v1600
  %v1733 = vunpack.c.l.b16 %v1601
  %v1734 = vunpack.c.l.b16 %v1602
  %v1735 = vunpack.c.l.b16 %v1603
  %v1736 = vunpack.c.l.b16 %v1604
  %v1737 = vunpack.c.l.b16 %v1605
  %v1738 = vunpack.c.l.b16 %v1606
  %v1739 = vunpack.c.l.b16 %v1607
  %v1740 = vunpack.c.l.b16 %v1608
  %v1741 = vunpack.c.l.b16 %v1609
  %v1742 = vunpack.c.l.b16 %v1610
  %v1743 = vunpack.c.l.b16 %v1611
  %v1744 = vunpack.c.l.b16 %v1612
  %v1745 = vunpack.c.l.b16 %v1613
  %v1746 = vunpack.c.l.b16 %v1614
  %v1747 = vunpack.c.l.b16 %v1615
  %v1748 = vunpack.c.l.b16 %v1616
  %v1749 = vunpack.c.l.b16 %v1617
  %v1750 = vunpack.c.l.b16 %v1618
  %v1751 = vunpack.c.l.b16 %v1619
  %v1752 = vunpack.c.l.b16 %v1620
  %v1753 = vunpack.c.l.b16 %v1621
  %v1754 = vunpack.c.l.b16 %v1622
  %v1755 = vunpack.c.l.b16 %v1623
  %v1756 = vunpack.c.l.b16 %v1624
  %v1757 = vunpack.c.l.b16 %v1625
  %v1758 = vunpack.c.l.b16 %v1626
  %v1759 = vunpack.c.l.b16 %v1627
  %v1760 = vunpack.c.l.b16 %v1628
  %v1761 = vunpack.c.l.b16 %v1629
  %v1762 = vunpack.c.l.b16 %v1630
  %v1763 = vunpack.c.l.b16 %v1631
  %v1764 = vunpack.c.l.b16 %v1632
  %v1765 = vunpack.c.l.b16 %v1633
  %v1766 = vunpack.c.l.b16 %v1634
  %v1767 = vunpack.c.l.b16 %v1635
  %v1768 = vunpack.c.l.b16 %v1636
  %v1769 = vunpack.c.l.b16 %v1637
  %v1770 = vunpack.c.l.b16 %v1638
  %v1771 = vunpack.c.l.b16 %v1639
  %v1772 = vunpack.c.l.b16 %v1640
  %v1773 = vunpack.c.l.b16 %v1641
  %v1774 = vunpack.c.l.b16 %v1642
  %v1775 = vunpack.c.l.b16 %v1643
  %v1776 = vunpack.c.l.b16 %v1644
  %v1777 = vunpack.c.l.b16 %v1645
  %v1778 = vunpack.c.l.b16 %v1646
  %v1779 = vunpack.c.l.b16 %v1647
  %v1780 = vunpack.c.l.b16 %v1648
  %v1781 = vunpack.c.l.b16 %v1649
  %v1782 = vunpack.c.l.b16 %v1650
  %v1783 = vunpack.c.l.b16 %v1651
  %v1784 = vunpack.c.l.b16 %v1652
  %v1785 = vunpack.c.l.b16 %v1653
  %v1786 = vunpack.c.l.b16 %v1654
  %v1787 = vunpack.c.l.b16 %v1655
  %v1788 = vunpack.c.l.b16 %v1656
  %v1789 = vunpack.c.l.b16 %v1657
  %v1790 = vunpack.c.l.b16 %v1658
  %v1791 = vunpack.c.l.b16 %v1659
  %v1792 = vunpack.c.l.b16 %v1660
  %v1793 = vpack.c.b16 %v1730, %v1729
  %v1794 = vpack.c.b16 %v1732, %v1731
  %v1795 = vpack.c.b16 %v1734, %v1733
  %v1796 = vpack.c.b16 %v1736, %v1735
  %v1797 = vpack.c.b16 %v1738, %v1737
  %v1798 = vpack.c.b16 %v1740, %v1739
  %v1799 = vpack.c.b16 %v1742, %v1741
  %v1800 = vpack.c.b16 %v1744, %v1743
  %v1801 = vpack.c.b16 %v1746, %v1745
  %v1802 = vpack.c.b16 %v1748, %v1747
  %v1803 = vpack.c.b16 %v1750, %v1749
  %v1804 = vpack.c.b16 %v1752, %v1751
  %v1805 = vpack.c.b16 %v1754, %v1753
  %v1806 = vpack.c.b16 %v1756, %v1755
  %v1807 = vpack.c.b16 %v1758, %v1757
  %v1808 = vpack.c.b16 %v1760, %v1759
  %v1809 = vpack.c.b16 %v1762, %v1761
  %v1810 = vpack.c.b16 %v1764, %v1763
  %v1811 = vpack.c.b16 %v1766, %v1765
  %v1812 = vpack.c.b16 %v1768, %v1767
  %v1813 = vpack.c.b16 %v1770, %v1769
  %v1814 = vpack.c.b16 %v1772, %v1771
  %v1815 = vpack.c.b16 %v1774, %v1773
  %v1816 = vpack.c.b16 %v1776, %v1775
  %v1817 = vpack.c.b16 %v1778, %v1777
  %v1818 = vpack.c.b16 %v1780, %v1779
  %v1819 = vpack.c.b16 %v1782, %v1781
  %v1820 = vpack.c.b16 %v1784, %v1783
  %v1821 = vpack.c.b16 %v1786, %v1785
  %v1822 = vpack.c.b16 %v1788, %v1787
  %v1823 = vpack.c.b16 %v1790, %v1789
  %v1824 = vpack.c.b16 %v1792, %v1791
  %1857 = vmatpush.bf16.msra.mxu0 %v1800
  %1858 = vmatpush.bf16.msra.mxu0 %v1799
  %1859 = vmatpush.bf16.msra.mxu0 %v1798
  %1860 = vmatpush.bf16.msra.mxu0 %v1797
  %1861 = vmatpush.bf16.msra.mxu0 %v1796
  %1862 = vmatpush.bf16.msra.mxu0 %v1795
  %1863 = vmatpush.bf16.msra.mxu0 %v1794
  %1864 = vmatpush.bf16.msra.mxu0 %v1793
  %1865 = vmatmul.bf16.gmra.mxu0 %v1593
  %v1866 = vpop.f32.mrf.mxu0
  %v1867 = vadd.f32 %v1663, %v1866
  %v1868 = vpop.f32.mrf.mxu0
  %1869 = vdwg.mxu0
  %1870 = vmatpush.bf16.msra.mxu0 %v1808
  %1871 = vmatpush.bf16.msra.mxu0 %v1807
  %1872 = vmatpush.bf16.msra.mxu0 %v1806
  %1873 = vmatpush.bf16.msra.mxu0 %v1805
  %1874 = vmatpush.bf16.msra.mxu0 %v1804
  %1875 = vmatpush.bf16.msra.mxu0 %v1803
  %1876 = vmatpush.bf16.msra.mxu0 %v1802
  %1877 = vmatpush.bf16.msra.mxu0 %v1801
  %1878 = vmatmul.bf16.gmra.mxu0 %v1594
  %v1879 = vpop.f32.mrf.mxu0
  %v1880 = vadd.f32 %v1867, %v1879
  %v1881 = vpop.f32.mrf.mxu0
  %1882 = vdwg.mxu0
  %1883 = vmatpush.bf16.msra.mxu0 %v1816
  %1884 = vmatpush.bf16.msra.mxu0 %v1815
  %1885 = vmatpush.bf16.msra.mxu0 %v1814
  %1886 = vmatpush.bf16.msra.mxu0 %v1813
  %1887 = vmatpush.bf16.msra.mxu0 %v1812
  %1888 = vmatpush.bf16.msra.mxu0 %v1811
  %1889 = vmatpush.bf16.msra.mxu0 %v1810
  %1890 = vmatpush.bf16.msra.mxu0 %v1809
  %1891 = vmatmul.bf16.gmra.mxu0 %v1595
  %v1892 = vpop.f32.mrf.mxu0
  %v1893 = vadd.f32 %v1880, %v1892
  %v1894 = vpop.f32.mrf.mxu0
  %1895 = vdwg.mxu0
  %1896 = vmatpush.bf16.msra.mxu0 %v1824
  %1897 = vmatpush.bf16.msra.mxu0 %v1823
  %1898 = vmatpush.bf16.msra.mxu0 %v1822
  %1899 = vmatpush.bf16.msra.mxu0 %v1821
  %1900 = vmatpush.bf16.msra.mxu0 %v1820
  %1901 = vmatpush.bf16.msra.mxu0 %v1819
  %1902 = vmatpush.bf16.msra.mxu0 %v1818
  %1903 = vmatpush.bf16.msra.mxu0 %v1817
  %1904 = vmatmul.bf16.gmra.mxu0 %v1596
  %v1905 = vpop.f32.mrf.mxu0
  %v1906 = vadd.f32 %v1893, %v1905
  %v1907 = vpop.f32.mrf.mxu0
  %1908 = vdwg.mxu0
  %v1909 = vpack.c.bf16 %v1906, %v1906
  %1910 = vst [vmem:[%s5] sm:$0xf] %v1909
  // Predicated region
  $region22: #{digit_classifier_forward.1} parent=0 // pred_check
    _
  $region23: #{digit_classifier_forward.1} parent=0 // pred_check_branch
    %1912 = sbr.rel (0) target = $region25
  $region24: #{digit_classifier_forward.1} parent=0 // pred_region
    _
  $region25: #{digit_classifier_forward.1} parent=0 // pred_fallthru
    _
  // Predicated region
  $region26: #{digit_classifier_forward.1} parent=0 // pred_check
    _
  $region27: #{digit_classifier_forward.1} parent=0 // pred_check_branch
    %1914 = sbr.rel (0) target = $region29
  $region28: #{digit_classifier_forward.1} parent=0 // pred_region
    _
  $region29: #{digit_classifier_forward.1} parent=0 // pred_fallthru
    _

</llo_original>
